<compile_context>
chip_gen: v6e
topology: v6e:2x2x1
jax: 0.10.0
libtpu: 0.0.40
codegen_flags: <defaults>
</compile_context>

<pallas_src>
import jax
import jax.numpy as jnp
import numpy as np
from jax.experimental import pallas as pl
from jax.experimental.pallas import tpu as pltpu

CHANNEL = 32          # `channel` in the PyTorch module
REDUCTION = 16        # `reduction`
SPATIAL_K = 9         # `spatial_kernel` (Conv1d(2, 1, 9, padding=4, bias=False))
GATE_K = 7            # spatial_gate Conv1d(1, 1, 7, padding=3)


def cbam_kernel(x_ref, w1t_ref, w2t_ref, wg1t_ref, bg1_ref, wg2t_ref, bg2_ref,
                wconv_ref, wsg_ref, bsg_ref, o_ref):
    Nb, C, L = x_ref.shape
    f32 = jnp.float32

    xb = x_ref[...].astype(f32)                                 # (Nb, C, L)

    # ---- 1. pooled descriptors, batch on sublanes: (2*Nb, C) = [max ; avg]
    mx = jnp.max(xb, axis=-1)                                   # (Nb, C)
    av = jnp.mean(xb, axis=-1)                                  # (Nb, C)
    pooled = jnp.concatenate([mx, av], axis=0)                  # (2Nb, C)

    # ---- 2. channel attention: shared MLP + channel_gate -------------------
    # Weights are pre-transposed host-side, so the batch stays on sublanes
    # and the whole block needs just 4 small matmuls.
    h = jnp.maximum(jnp.dot(pooled, w1t_ref[...],
                            preferred_element_type=f32), 0.0)   # (2Nb, Cr)
    m = jnp.dot(h, w2t_ref[...], preferred_element_type=f32)    # (2Nb, C)
    channel_out = jax.nn.sigmoid(m[:Nb] + m[Nb:])               # (Nb, C)

    # channel_gate: AdaptiveAvgPool1d(1) is exactly the identity on a
    # length-1 input, so it is elided (mathematically exact, not a shortcut).
    g1 = jnp.maximum(
        jnp.dot(channel_out, wg1t_ref[...], preferred_element_type=f32)
        + bg1_ref[...], 0.0)                                    # (Nb, C2)
    att = jax.nn.sigmoid(
        jnp.dot(g1, wg2t_ref[...], preferred_element_type=f32)
        + bg2_ref[...])                                         # (Nb, C)

    # ---- 3. channel-scaled input + cross-channel max/mean (whole block) ----
    x2 = att[:, :, None] * xb                                   # (Nb, C, L)
    cmax = jnp.max(x2, axis=1)                                  # (Nb, L)
    cavg = jnp.mean(x2, axis=1)                                 # (Nb, L)
    stacked = jnp.concatenate([cmax, cavg], axis=0)             # (2Nb, L)

    # ---- 4. fused 'same' convolutions via lane rotations -------------------
    # One pltpu.roll per tap, shared by all Nb slabs and by both pooled rows;
    # wrapped lanes are zeroed with an iota mask (zero padding).  The per-tap
    # weights are applied as two scalar FMAs on the two row halves (the
    # per-tap vector select of the old version is gone).
    lane2 = jax.lax.broadcasted_iota(jnp.int32, (2 * Nb, L), 1)
    pad = SPATIAL_K // 2
    acc = jnp.zeros((Nb, L), f32)
    for k in range(SPATIAL_K):                                  # static, 9 taps
        shift = pad - k
        if shift == 0:
            sh = stacked
        else:
            sh = pltpu.roll(stacked, shift=shift % L, axis=1)
            lo, hi = max(0, shift), min(L, L + shift)
            sh = jnp.where((lane2 >= lo) & (lane2 < hi), sh, 0.0)
        acc = acc + wconv_ref[0, k] * sh[:Nb] + wconv_ref[1, k] * sh[Nb:]
    spatial_out = jax.nn.sigmoid(acc)                           # (Nb, L)

    lane1 = jax.lax.broadcasted_iota(jnp.int32, (Nb, L), 1)
    padg = GATE_K // 2
    sg = jnp.zeros((Nb, L), f32)
    for k in range(GATE_K):                                     # static, 7 taps
        shift = padg - k
        if shift == 0:
            sh = spatial_out
        else:
            sh = pltpu.roll(spatial_out, shift=shift % L, axis=1)
            lo, hi = max(0, shift), min(L, L + shift)
            sh = jnp.where((lane1 >= lo) & (lane1 < hi), sh, 0.0)
        sg = sg + wsg_ref[0, k] * sh
    spatial_att = jax.nn.sigmoid(sg + bsg_ref[0, 0])            # (Nb, L)

    # ---- 5. write out (x2 kept live, one statement) -------------------------
    o_ref[...] = (spatial_att[:, None, :] * x2).astype(o_ref.dtype)


def _default_min_steps():
    """>=2 grid steps on chips with 2 TensorCores (megacore / v7x) so the
    'parallel' grid axis can be sharded across them; 1 everywhere else."""
    try:
        kind = jax.devices()[0].device_kind.lower()
    except Exception:
        return 1
    return 2 if any(t in kind for t in ("v7", "v4", "v5p")) else 1


def _pick_block_batch(N, C, L, *, itemsize=4, vmem_budget_bytes=2 << 20,
                      min_steps=1):
    """Number of batch slabs per grid step.

    As large as the per-block VMEM budget allows (whole batch for small N) so
    the fixed ~0.35 us/step overhead is amortised, capped so that the
    double-buffered in+out blocks plus the in-kernel live intermediates
    (x2 etc.) stay comfortably under the 16 MiB v5e scoped-VMEM default
    (32 MiB on v6e/v7x).  `min_steps` keeps at least that many grid steps on
    2-TensorCore chips.  The wrapper pads N up to a multiple of the result.
    """
    slab = C * L * itemsize
    cap = max(1, min(N, vmem_budget_bytes // slab))
    if min_steps > 1 and N > 1:
        cap = min(cap, max(1, pl.cdiv(N, min_steps)))
    return cap


def cbam_forward(x, params, *, min_steps=None):
    w1, w2, wg1, bg1, wg2, bg2, wconv, wsg, bsg = params
    N, C, L = x.shape
    Cr = w1.shape[0]
    C2 = wg1.shape[0]
    # L must stay a multiple of 128 for the lane mapping / roll-conv to hold.
    assert L % 128 == 0, "L must be a multiple of 128"

    if min_steps is None:
        min_steps = _default_min_steps()

    Nb = _pick_block_batch(N, C, L, itemsize=x.dtype.itemsize,
                           min_steps=min_steps)
    steps = pl.cdiv(N, Nb)
    Npad = steps * Nb
    xp = x if Npad == N else jnp.pad(x, ((0, Npad - N), (0, 0), (0, 0)))

    # Host-side weight transposes (free relative to kernel time); keeps the
    # batch on sublanes inside the kernel with no in-kernel transposes.
    w1t = jnp.transpose(w1)            # (C,  Cr)
    w2t = jnp.transpose(w2)            # (Cr, C)
    wg1t = jnp.transpose(wg1)          # (C,  C2)
    wg2t = jnp.transpose(wg2)          # (C2, C)
    bg1r = bg1.reshape(1, C2)          # row-vector biases
    bg2r = bg2.reshape(1, C)

    def vmem_full(shape):
        return pl.BlockSpec(shape, lambda b, _n=len(shape): (0,) * _n)

    smem_spec = pl.BlockSpec(memory_space=pltpu.MemorySpace.SMEM)

    out = pl.pallas_call(
        cbam_kernel,
        out_shape=jax.ShapeDtypeStruct((Npad, C, L), x.dtype),
        grid=(steps,),
        in_specs=[
            pl.BlockSpec((Nb, C, L), lambda b: (b, 0, 0)),  # x: Nb batch slabs
            vmem_full((C, Cr)),                             # mlp conv1 W^T
            vmem_full((Cr, C)),                             # mlp conv2 W^T
            vmem_full((C, C2)),                             # channel_gate conv1 W^T
            vmem_full((1, C2)),                             # channel_gate conv1 b
            vmem_full((C2, C)),                             # channel_gate conv2 W^T
            vmem_full((1, C)),                              # channel_gate conv2 b
            smem_spec,                                      # spatial conv W (2, 9)
            smem_spec,                                      # spatial_gate W (1, 7)
            smem_spec,                                      # spatial_gate b (1, 1)
        ],
        out_specs=pl.BlockSpec((Nb, C, L), lambda b: (b, 0, 0)),
        compiler_params=pltpu.CompilerParams(dimension_semantics=("parallel",)),
    )(xp, w1t, w2t, wg1t, bg1r, wg2t, bg2r, wconv, wsg, bsg)

    return out if Npad == N else out[:N]


def reference(x, params):
    """Pure-JAX reference mirroring the PyTorch forward exactly."""
    w1, w2, wg1, bg1, wg2, bg2, wconv, wsg, bsg = params

    def conv1x1(w, v):                       # w (O, I), v (N, I, L)
        return jnp.einsum('oi,nil->nol', w, v)

    def conv1d(v, w_oik, pad):
        return jax.lax.conv_general_dilated(
            v, w_oik, window_strides=(1,), padding=[(pad, pad)],
            dimension_numbers=('NCH', 'OIH', 'NCH'))

    xm = jnp.max(x, axis=-1, keepdims=True)
    xa = jnp.mean(x, axis=-1, keepdims=True)

    def mlp(v):
        return conv1x1(w2, jax.nn.relu(conv1x1(w1, v)))

    channel_out = jax.nn.sigmoid(mlp(xm) + mlp(xa))
    g1 = jax.nn.relu(conv1x1(wg1, channel_out) + bg1[None])
    channel_att = jax.nn.sigmoid(conv1x1(wg2, g1) + bg2[None])
    x2 = channel_att * x

    cmax = jnp.max(x2, axis=1, keepdims=True)
    cavg = jnp.mean(x2, axis=1, keepdims=True)
    cat = jnp.concatenate([cmax, cavg], axis=1)                 # (N, 2, L)
    spatial_out = jax.nn.sigmoid(conv1d(cat, wconv[None], SPATIAL_K // 2))
    spatial_att = jax.nn.sigmoid(conv1d(spatial_out, wsg[None], GATE_K // 2)
                                 + bsg[0, 0])
    return spatial_att * x2


if __name__ == "__main__":
    key = jax.random.PRNGKey(0)
    ks = jax.random.split(key, 10)

    N, C, L = 8, CHANNEL, 128          # whole batch fits in one (or two) blocks
    Cr = C // REDUCTION
    C2 = C // 2

    x = jax.random.normal(ks[0], (N, C, L), jnp.float32)

    # Deterministic synthetic parameters (shapes from the module's __init__).
    w1 = jax.random.normal(ks[1], (Cr, C), jnp.float32) * 0.2     # mlp[0]
    w2 = jax.random.normal(ks[2], (C, Cr), jnp.float32) * 0.2     # mlp[2]
    wg1 = jax.random.normal(ks[3], (C2, C), jnp.float32) * 0.2    # channel_gate[1] W
    bg1 = jax.random.normal(ks[4], (C2, 1), jnp.float32) * 0.1    # channel_gate[1] b
    wg2 = jax.random.normal(ks[5], (C, C2), jnp.float32) * 0.2    # channel_gate[3] W
    bg2 = jax.random.normal(ks[6], (C, 1), jnp.float32) * 0.1     # channel_gate[3] b
    wconv = jax.random.normal(ks[7], (2, SPATIAL_K), jnp.float32) * 0.2  # conv (1,2,9)
    wsg = jax.random.normal(ks[8], (1, GATE_K), jnp.float32) * 0.2       # spatial_gate W
    bsg = jax.random.normal(ks[9], (1, 1), jnp.float32) * 0.1            # spatial_gate b

    params = (w1, w2, wg1, bg1, wg2, bg2, wconv, wsg, bsg)

    out = cbam_forward(x, params)
    out = jax.block_until_ready(out)

    ref = reference(x, params)
    np.testing.assert_allclose(np.asarray(out), np.asarray(ref),
                               rtol=1e-4, atol=1e-5)
    print("KERNEL_OK")
</pallas_src>

<mosaic_0001>
module attributes {stable_mosaic.version = 11 : i64} {
  func.func @cbam_kernel(%arg0: i32, %arg1: memref<8x32x128xf32, #tpu.memory_space<vmem>>, %arg2: memref<32x2xf32, #tpu.memory_space<vmem>>, %arg3: memref<2x32xf32, #tpu.memory_space<vmem>>, %arg4: memref<32x16xf32, #tpu.memory_space<vmem>>, %arg5: memref<1x16xf32, #tpu.memory_space<vmem>>, %arg6: memref<16x32xf32, #tpu.memory_space<vmem>>, %arg7: memref<1x32xf32, #tpu.memory_space<vmem>>, %arg8: memref<2x9xf32, #tpu.memory_space<smem>>, %arg9: memref<1x7xf32, #tpu.memory_space<smem>>, %arg10: memref<1x1xf32, #tpu.memory_space<smem>>, %arg11: memref<8x32x128xf32, #tpu.memory_space<vmem>>) attributes {dimension_semantics = [#tpu.dimension_semantics<parallel>], iteration_bounds = array<i64: 1>, scalar_prefetch = 0 : i64, scratch_operands = 0 : i64, tpu.core_type = #tpu.core_type<tc>, window_params = [{transform_indices = @transform_0, window_bounds = array<i64: 8, 32, 128>}, {pipeline_mode = #tpu.pipeline_mode<synchronous>, transform_indices = @transform_1, window_bounds = array<i64: 32, 2>}, {pipeline_mode = #tpu.pipeline_mode<synchronous>, transform_indices = @transform_2, window_bounds = array<i64: 2, 32>}, {pipeline_mode = #tpu.pipeline_mode<synchronous>, transform_indices = @transform_3, window_bounds = array<i64: 32, 16>}, {pipeline_mode = #tpu.pipeline_mode<synchronous>, transform_indices = @transform_4, window_bounds = array<i64: 1, 16>}, {pipeline_mode = #tpu.pipeline_mode<synchronous>, transform_indices = @transform_5, window_bounds = array<i64: 16, 32>}, {pipeline_mode = #tpu.pipeline_mode<synchronous>, transform_indices = @transform_6, window_bounds = array<i64: 1, 32>}, {transform_indices = @transform_7, window_bounds = array<i64: 2, 9>}, {transform_indices = @transform_8, window_bounds = array<i64: 1, 7>}, {transform_indices = @transform_9, window_bounds = array<i64: 1, 1>}, {transform_indices = @transform_10, window_bounds = array<i64: 8, 32, 128>}]} {
    %c0 = arith.constant 0 : index
    %c0_0 = arith.constant 0 : index
    %c0_1 = arith.constant 0 : index
    %0 = vector.load %arg1[%c0, %c0_0, %c0_1] : memref<8x32x128xf32, #tpu.memory_space<vmem>>, vector<8x32x128xf32>
    %cst = arith.constant dense<0xFF800000> : vector<8x32xf32>
    %1 = vector.multi_reduction <maximumf>, %0, %cst [2] : vector<8x32x128xf32> to vector<8x32xf32>
    %cst_2 = arith.constant dense<0.000000e+00> : vector<8x32xf32>
    %2 = vector.multi_reduction <add>, %0, %cst_2 [2] : vector<8x32x128xf32> to vector<8x32xf32>
    %cst_3 = arith.constant 1.280000e+02 : f32
    %3 = vector.broadcast %cst_3 : f32 to vector<8x32xf32>
    %4 = arith.divf %2, %3 : vector<8x32xf32>
    %5 = tpu.concatenate %1, %4 in 0 : vector<8x32xf32>, vector<8x32xf32> -> vector<16x32xf32>
    %c0_4 = arith.constant 0 : index
    %c0_5 = arith.constant 0 : index
    %6 = vector.load %arg2[%c0_4, %c0_5] : memref<32x2xf32, #tpu.memory_space<vmem>>, vector<32x2xf32>
    %cst_6 = arith.constant dense<0.000000e+00> : vector<16x2xf32>
    %7 = tpu.matmul %5, %6, %cst_6 {dimension_numbers = #tpu.dot_dimension_numbers<[1], [0], [0], [1], [0, 0, 1, 1], [], []>} : vector<16x32xf32>, vector<32x2xf32>, vector<16x2xf32> -> vector<16x2xf32>
    %cst_7 = arith.constant 0.000000e+00 : f32
    %8 = vector.broadcast %cst_7 : f32 to vector<16x2xf32>
    %9 = arith.maximumf %7, %8 : vector<16x2xf32>
    %c0_8 = arith.constant 0 : index
    %c0_9 = arith.constant 0 : index
    %10 = vector.load %arg3[%c0_8, %c0_9] : memref<2x32xf32, #tpu.memory_space<vmem>>, vector<2x32xf32>
    %cst_10 = arith.constant dense<0.000000e+00> : vector<16x32xf32>
    %11 = tpu.matmul %9, %10, %cst_10 {dimension_numbers = #tpu.dot_dimension_numbers<[1], [0], [0], [1], [0, 0, 1, 1], [], []>} : vector<16x2xf32>, vector<2x32xf32>, vector<16x32xf32> -> vector<16x32xf32>
    %12 = vector.extract_strided_slice %11 {offsets = [0, 0], sizes = [8, 32], strides = [1, 1]} : vector<16x32xf32> to vector<8x32xf32>
    %13 = vector.extract_strided_slice %11 {offsets = [8, 0], sizes = [8, 32], strides = [1, 1]} : vector<16x32xf32> to vector<8x32xf32>
    %14 = arith.addf %12, %13 : vector<8x32xf32>
    %15 = arith.negf %14 : vector<8x32xf32>
    %16 = math.exp %15 : vector<8x32xf32>
    %cst_11 = arith.constant 1.000000e+00 : f32
    %17 = vector.broadcast %cst_11 : f32 to vector<8x32xf32>
    %18 = arith.addf %17, %16 : vector<8x32xf32>
    %19 = arith.divf %17, %18 : vector<8x32xf32>
    %c0_12 = arith.constant 0 : index
    %c0_13 = arith.constant 0 : index
    %20 = vector.load %arg4[%c0_12, %c0_13] : memref<32x16xf32, #tpu.memory_space<vmem>>, vector<32x16xf32>
    %cst_14 = arith.constant dense<0.000000e+00> : vector<8x16xf32>
    %21 = tpu.matmul %19, %20, %cst_14 {dimension_numbers = #tpu.dot_dimension_numbers<[1], [0], [0], [1], [0, 0, 1, 1], [], []>} : vector<8x32xf32>, vector<32x16xf32>, vector<8x16xf32> -> vector<8x16xf32>
    %c0_15 = arith.constant 0 : index
    %c0_16 = arith.constant 0 : index
    %22 = vector.load %arg5[%c0_15, %c0_16] : memref<1x16xf32, #tpu.memory_space<vmem>>, vector<1x16xf32>
    %23 = vector.broadcast %22 : vector<1x16xf32> to vector<8x16xf32>
    %24 = arith.addf %21, %23 : vector<8x16xf32>
    %cst_17 = arith.constant 0.000000e+00 : f32
    %25 = vector.broadcast %cst_17 : f32 to vector<8x16xf32>
    %26 = arith.maximumf %24, %25 : vector<8x16xf32>
    %c0_18 = arith.constant 0 : index
    %c0_19 = arith.constant 0 : index
    %27 = vector.load %arg6[%c0_18, %c0_19] : memref<16x32xf32, #tpu.memory_space<vmem>>, vector<16x32xf32>
    %cst_20 = arith.constant dense<0.000000e+00> : vector<8x32xf32>
    %28 = tpu.matmul %26, %27, %cst_20 {dimension_numbers = #tpu.dot_dimension_numbers<[1], [0], [0], [1], [0, 0, 1, 1], [], []>} : vector<8x16xf32>, vector<16x32xf32>, vector<8x32xf32> -> vector<8x32xf32>
    %c0_21 = arith.constant 0 : index
    %c0_22 = arith.constant 0 : index
    %29 = vector.load %arg7[%c0_21, %c0_22] : memref<1x32xf32, #tpu.memory_space<vmem>>, vector<1x32xf32>
    %30 = vector.broadcast %29 : vector<1x32xf32> to vector<8x32xf32>
    %31 = arith.addf %28, %30 : vector<8x32xf32>
    %32 = arith.negf %31 : vector<8x32xf32>
    %33 = math.exp %32 : vector<8x32xf32>
    %cst_23 = arith.constant 1.000000e+00 : f32
    %34 = vector.broadcast %cst_23 : f32 to vector<8x32xf32>
    %35 = arith.addf %34, %33 : vector<8x32xf32>
    %36 = arith.divf %34, %35 : vector<8x32xf32>
    %37 = vector.shape_cast %36 : vector<8x32xf32> to vector<8x32x1xf32>
    %38 = vector.broadcast %37 : vector<8x32x1xf32> to vector<8x32x128xf32>
    %39 = arith.mulf %38, %0 : vector<8x32x128xf32>
    %cst_24 = arith.constant dense<0xFF800000> : vector<8x128xf32>
    %40 = vector.multi_reduction <maximumf>, %39, %cst_24 [1] : vector<8x32x128xf32> to vector<8x128xf32>
    %cst_25 = arith.constant dense<0.000000e+00> : vector<8x128xf32>
    %41 = vector.multi_reduction <add>, %39, %cst_25 [1] : vector<8x32x128xf32> to vector<8x128xf32>
    %cst_26 = arith.constant 3.200000e+01 : f32
    %42 = vector.broadcast %cst_26 : f32 to vector<8x128xf32>
    %43 = arith.divf %41, %42 : vector<8x128xf32>
    %44 = tpu.concatenate %40, %43 in 0 : vector<8x128xf32>, vector<8x128xf32> -> vector<16x128xf32>
    %45 = tpu.iota {dimensions = array<i32: 1>} : vector<16x128xi32>
    %cst_27 = arith.constant 0.000000e+00 : f32
    %46 = vector.broadcast %cst_27 : f32 to vector<8x128xf32>
    %c4_i32 = arith.constant 4 : i32
    %47 = tpu.dynamic_rotate %44 by %c4_i32 dim 1 : vector<16x128xf32>, i32 -> vector<16x128xf32>
    %c4_i32_28 = arith.constant 4 : i32
    %48 = vector.broadcast %c4_i32_28 : i32 to vector<16x128xi32>
    %49 = arith.cmpi sge, %45, %48 : vector<16x128xi32>
    %c128_i32 = arith.constant 128 : i32
    %50 = vector.broadcast %c128_i32 : i32 to vector<16x128xi32>
    %51 = arith.cmpi slt, %45, %50 : vector<16x128xi32>
    %52 = arith.andi %49, %51 : vector<16x128xi1>
    %cst_29 = arith.constant 0.000000e+00 : f32
    %53 = vector.broadcast %cst_29 : f32 to vector<16x128xf32>
    %54 = arith.select %52, %47, %53 : vector<16x128xi1>, vector<16x128xf32>
    %c0_30 = arith.constant 0 : index
    %c0_31 = arith.constant 0 : index
    %55 = memref.load %arg8[%c0_30, %c0_31] : memref<2x9xf32, #tpu.memory_space<smem>>
    %56 = vector.extract_strided_slice %54 {offsets = [0, 0], sizes = [8, 128], strides = [1, 1]} : vector<16x128xf32> to vector<8x128xf32>
    %57 = vector.broadcast %55 : f32 to vector<8x128xf32>
    %58 = arith.mulf %57, %56 : vector<8x128xf32>
    %59 = arith.addf %46, %58 : vector<8x128xf32>
    %c1 = arith.constant 1 : index
    %c0_32 = arith.constant 0 : index
    %60 = memref.load %arg8[%c1, %c0_32] : memref<2x9xf32, #tpu.memory_space<smem>>
    %61 = vector.extract_strided_slice %54 {offsets = [8, 0], sizes = [8, 128], strides = [1, 1]} : vector<16x128xf32> to vector<8x128xf32>
    %62 = vector.broadcast %60 : f32 to vector<8x128xf32>
    %63 = arith.mulf %62, %61 : vector<8x128xf32>
    %64 = arith.addf %59, %63 : vector<8x128xf32>
    %c3_i32 = arith.constant 3 : i32
    %65 = tpu.dynamic_rotate %44 by %c3_i32 dim 1 : vector<16x128xf32>, i32 -> vector<16x128xf32>
    %c3_i32_33 = arith.constant 3 : i32
    %66 = vector.broadcast %c3_i32_33 : i32 to vector<16x128xi32>
    %67 = arith.cmpi sge, %45, %66 : vector<16x128xi32>
    %c128_i32_34 = arith.constant 128 : i32
    %68 = vector.broadcast %c128_i32_34 : i32 to vector<16x128xi32>
    %69 = arith.cmpi slt, %45, %68 : vector<16x128xi32>
    %70 = arith.andi %67, %69 : vector<16x128xi1>
    %cst_35 = arith.constant 0.000000e+00 : f32
    %71 = vector.broadcast %cst_35 : f32 to vector<16x128xf32>
    %72 = arith.select %70, %65, %71 : vector<16x128xi1>, vector<16x128xf32>
    %c0_36 = arith.constant 0 : index
    %c1_37 = arith.constant 1 : index
    %73 = memref.load %arg8[%c0_36, %c1_37] : memref<2x9xf32, #tpu.memory_space<smem>>
    %74 = vector.extract_strided_slice %72 {offsets = [0, 0], sizes = [8, 128], strides = [1, 1]} : vector<16x128xf32> to vector<8x128xf32>
    %75 = vector.broadcast %73 : f32 to vector<8x128xf32>
    %76 = arith.mulf %75, %74 : vector<8x128xf32>
    %77 = arith.addf %64, %76 : vector<8x128xf32>
    %c1_38 = arith.constant 1 : index
    %c1_39 = arith.constant 1 : index
    %78 = memref.load %arg8[%c1_38, %c1_39] : memref<2x9xf32, #tpu.memory_space<smem>>
    %79 = vector.extract_strided_slice %72 {offsets = [8, 0], sizes = [8, 128], strides = [1, 1]} : vector<16x128xf32> to vector<8x128xf32>
    %80 = vector.broadcast %78 : f32 to vector<8x128xf32>
    %81 = arith.mulf %80, %79 : vector<8x128xf32>
    %82 = arith.addf %77, %81 : vector<8x128xf32>
    %c2_i32 = arith.constant 2 : i32
    %83 = tpu.dynamic_rotate %44 by %c2_i32 dim 1 : vector<16x128xf32>, i32 -> vector<16x128xf32>
    %c2_i32_40 = arith.constant 2 : i32
    %84 = vector.broadcast %c2_i32_40 : i32 to vector<16x128xi32>
    %85 = arith.cmpi sge, %45, %84 : vector<16x128xi32>
    %c128_i32_41 = arith.constant 128 : i32
    %86 = vector.broadcast %c128_i32_41 : i32 to vector<16x128xi32>
    %87 = arith.cmpi slt, %45, %86 : vector<16x128xi32>
    %88 = arith.andi %85, %87 : vector<16x128xi1>
    %cst_42 = arith.constant 0.000000e+00 : f32
    %89 = vector.broadcast %cst_42 : f32 to vector<16x128xf32>
    %90 = arith.select %88, %83, %89 : vector<16x128xi1>, vector<16x128xf32>
    %c0_43 = arith.constant 0 : index
    %c2 = arith.constant 2 : index
    %91 = memref.load %arg8[%c0_43, %c2] : memref<2x9xf32, #tpu.memory_space<smem>>
    %92 = vector.extract_strided_slice %90 {offsets = [0, 0], sizes = [8, 128], strides = [1, 1]} : vector<16x128xf32> to vector<8x128xf32>
    %93 = vector.broadcast %91 : f32 to vector<8x128xf32>
    %94 = arith.mulf %93, %92 : vector<8x128xf32>
    %95 = arith.addf %82, %94 : vector<8x128xf32>
    %c1_44 = arith.constant 1 : index
    %c2_45 = arith.constant 2 : index
    %96 = memref.load %arg8[%c1_44, %c2_45] : memref<2x9xf32, #tpu.memory_space<smem>>
    %97 = vector.extract_strided_slice %90 {offsets = [8, 0], sizes = [8, 128], strides = [1, 1]} : vector<16x128xf32> to vector<8x128xf32>
    %98 = vector.broadcast %96 : f32 to vector<8x128xf32>
    %99 = arith.mulf %98, %97 : vector<8x128xf32>
    %100 = arith.addf %95, %99 : vector<8x128xf32>
    %c1_i32 = arith.constant 1 : i32
    %101 = tpu.dynamic_rotate %44 by %c1_i32 dim 1 : vector<16x128xf32>, i32 -> vector<16x128xf32>
    %c1_i32_46 = arith.constant 1 : i32
    %102 = vector.broadcast %c1_i32_46 : i32 to vector<16x128xi32>
    %103 = arith.cmpi sge, %45, %102 : vector<16x128xi32>
    %c128_i32_47 = arith.constant 128 : i32
    %104 = vector.broadcast %c128_i32_47 : i32 to vector<16x128xi32>
    %105 = arith.cmpi slt, %45, %104 : vector<16x128xi32>
    %106 = arith.andi %103, %105 : vector<16x128xi1>
    %cst_48 = arith.constant 0.000000e+00 : f32
    %107 = vector.broadcast %cst_48 : f32 to vector<16x128xf32>
    %108 = arith.select %106, %101, %107 : vector<16x128xi1>, vector<16x128xf32>
    %c0_49 = arith.constant 0 : index
    %c3 = arith.constant 3 : index
    %109 = memref.load %arg8[%c0_49, %c3] : memref<2x9xf32, #tpu.memory_space<smem>>
    %110 = vector.extract_strided_slice %108 {offsets = [0, 0], sizes = [8, 128], strides = [1, 1]} : vector<16x128xf32> to vector<8x128xf32>
    %111 = vector.broadcast %109 : f32 to vector<8x128xf32>
    %112 = arith.mulf %111, %110 : vector<8x128xf32>
    %113 = arith.addf %100, %112 : vector<8x128xf32>
    %c1_50 = arith.constant 1 : index
    %c3_51 = arith.constant 3 : index
    %114 = memref.load %arg8[%c1_50, %c3_51] : memref<2x9xf32, #tpu.memory_space<smem>>
    %115 = vector.extract_strided_slice %108 {offsets = [8, 0], sizes = [8, 128], strides = [1, 1]} : vector<16x128xf32> to vector<8x128xf32>
    %116 = vector.broadcast %114 : f32 to vector<8x128xf32>
    %117 = arith.mulf %116, %115 : vector<8x128xf32>
    %118 = arith.addf %113, %117 : vector<8x128xf32>
    %c0_52 = arith.constant 0 : index
    %c4 = arith.constant 4 : index
    %119 = memref.load %arg8[%c0_52, %c4] : memref<2x9xf32, #tpu.memory_space<smem>>
    %120 = vector.extract_strided_slice %44 {offsets = [0, 0], sizes = [8, 128], strides = [1, 1]} : vector<16x128xf32> to vector<8x128xf32>
    %121 = vector.broadcast %119 : f32 to vector<8x128xf32>
    %122 = arith.mulf %121, %120 : vector<8x128xf32>
    %123 = arith.addf %118, %122 : vector<8x128xf32>
    %c1_53 = arith.constant 1 : index
    %c4_54 = arith.constant 4 : index
    %124 = memref.load %arg8[%c1_53, %c4_54] : memref<2x9xf32, #tpu.memory_space<smem>>
    %125 = vector.extract_strided_slice %44 {offsets = [8, 0], sizes = [8, 128], strides = [1, 1]} : vector<16x128xf32> to vector<8x128xf32>
    %126 = vector.broadcast %124 : f32 to vector<8x128xf32>
    %127 = arith.mulf %126, %125 : vector<8x128xf32>
    %128 = arith.addf %123, %127 : vector<8x128xf32>
    %c127_i32 = arith.constant 127 : i32
    %129 = tpu.dynamic_rotate %44 by %c127_i32 dim 1 : vector<16x128xf32>, i32 -> vector<16x128xf32>
    %c0_i32 = arith.constant 0 : i32
    %130 = vector.broadcast %c0_i32 : i32 to vector<16x128xi32>
    %131 = arith.cmpi sge, %45, %130 : vector<16x128xi32>
    %c127_i32_55 = arith.constant 127 : i32
    %132 = vector.broadcast %c127_i32_55 : i32 to vector<16x128xi32>
    %133 = arith.cmpi slt, %45, %132 : vector<16x128xi32>
    %134 = arith.andi %131, %133 : vector<16x128xi1>
    %cst_56 = arith.constant 0.000000e+00 : f32
    %135 = vector.broadcast %cst_56 : f32 to vector<16x128xf32>
    %136 = arith.select %134, %129, %135 : vector<16x128xi1>, vector<16x128xf32>
    %c0_57 = arith.constant 0 : index
    %c5 = arith.constant 5 : index
    %137 = memref.load %arg8[%c0_57, %c5] : memref<2x9xf32, #tpu.memory_space<smem>>
    %138 = vector.extract_strided_slice %136 {offsets = [0, 0], sizes = [8, 128], strides = [1, 1]} : vector<16x128xf32> to vector<8x128xf32>
    %139 = vector.broadcast %137 : f32 to vector<8x128xf32>
    %140 = arith.mulf %139, %138 : vector<8x128xf32>
    %141 = arith.addf %128, %140 : vector<8x128xf32>
    %c1_58 = arith.constant 1 : index
    %c5_59 = arith.constant 5 : index
    %142 = memref.load %arg8[%c1_58, %c5_59] : memref<2x9xf32, #tpu.memory_space<smem>>
    %143 = vector.extract_strided_slice %136 {offsets = [8, 0], sizes = [8, 128], strides = [1, 1]} : vector<16x128xf32> to vector<8x128xf32>
    %144 = vector.broadcast %142 : f32 to vector<8x128xf32>
    %145 = arith.mulf %144, %143 : vector<8x128xf32>
    %146 = arith.addf %141, %145 : vector<8x128xf32>
    %c126_i32 = arith.constant 126 : i32
    %147 = tpu.dynamic_rotate %44 by %c126_i32 dim 1 : vector<16x128xf32>, i32 -> vector<16x128xf32>
    %c0_i32_60 = arith.constant 0 : i32
    %148 = vector.broadcast %c0_i32_60 : i32 to vector<16x128xi32>
    %149 = arith.cmpi sge, %45, %148 : vector<16x128xi32>
    %c126_i32_61 = arith.constant 126 : i32
    %150 = vector.broadcast %c126_i32_61 : i32 to vector<16x128xi32>
    %151 = arith.cmpi slt, %45, %150 : vector<16x128xi32>
    %152 = arith.andi %149, %151 : vector<16x128xi1>
    %cst_62 = arith.constant 0.000000e+00 : f32
    %153 = vector.broadcast %cst_62 : f32 to vector<16x128xf32>
    %154 = arith.select %152, %147, %153 : vector<16x128xi1>, vector<16x128xf32>
    %c0_63 = arith.constant 0 : index
    %c6 = arith.constant 6 : index
    %155 = memref.load %arg8[%c0_63, %c6] : memref<2x9xf32, #tpu.memory_space<smem>>
    %156 = vector.extract_strided_slice %154 {offsets = [0, 0], sizes = [8, 128], strides = [1, 1]} : vector<16x128xf32> to vector<8x128xf32>
    %157 = vector.broadcast %155 : f32 to vector<8x128xf32>
    %158 = arith.mulf %157, %156 : vector<8x128xf32>
    %159 = arith.addf %146, %158 : vector<8x128xf32>
    %c1_64 = arith.constant 1 : index
    %c6_65 = arith.constant 6 : index
    %160 = memref.load %arg8[%c1_64, %c6_65] : memref<2x9xf32, #tpu.memory_space<smem>>
    %161 = vector.extract_strided_slice %154 {offsets = [8, 0], sizes = [8, 128], strides = [1, 1]} : vector<16x128xf32> to vector<8x128xf32>
    %162 = vector.broadcast %160 : f32 to vector<8x128xf32>
    %163 = arith.mulf %162, %161 : vector<8x128xf32>
    %164 = arith.addf %159, %163 : vector<8x128xf32>
    %c125_i32 = arith.constant 125 : i32
    %165 = tpu.dynamic_rotate %44 by %c125_i32 dim 1 : vector<16x128xf32>, i32 -> vector<16x128xf32>
    %c0_i32_66 = arith.constant 0 : i32
    %166 = vector.broadcast %c0_i32_66 : i32 to vector<16x128xi32>
    %167 = arith.cmpi sge, %45, %166 : vector<16x128xi32>
    %c125_i32_67 = arith.constant 125 : i32
    %168 = vector.broadcast %c125_i32_67 : i32 to vector<16x128xi32>
    %169 = arith.cmpi slt, %45, %168 : vector<16x128xi32>
    %170 = arith.andi %167, %169 : vector<16x128xi1>
    %cst_68 = arith.constant 0.000000e+00 : f32
    %171 = vector.broadcast %cst_68 : f32 to vector<16x128xf32>
    %172 = arith.select %170, %165, %171 : vector<16x128xi1>, vector<16x128xf32>
    %c0_69 = arith.constant 0 : index
    %c7 = arith.constant 7 : index
    %173 = memref.load %arg8[%c0_69, %c7] : memref<2x9xf32, #tpu.memory_space<smem>>
    %174 = vector.extract_strided_slice %172 {offsets = [0, 0], sizes = [8, 128], strides = [1, 1]} : vector<16x128xf32> to vector<8x128xf32>
    %175 = vector.broadcast %173 : f32 to vector<8x128xf32>
    %176 = arith.mulf %175, %174 : vector<8x128xf32>
    %177 = arith.addf %164, %176 : vector<8x128xf32>
    %c1_70 = arith.constant 1 : index
    %c7_71 = arith.constant 7 : index
    %178 = memref.load %arg8[%c1_70, %c7_71] : memref<2x9xf32, #tpu.memory_space<smem>>
    %179 = vector.extract_strided_slice %172 {offsets = [8, 0], sizes = [8, 128], strides = [1, 1]} : vector<16x128xf32> to vector<8x128xf32>
    %180 = vector.broadcast %178 : f32 to vector<8x128xf32>
    %181 = arith.mulf %180, %179 : vector<8x128xf32>
    %182 = arith.addf %177, %181 : vector<8x128xf32>
    %c124_i32 = arith.constant 124 : i32
    %183 = tpu.dynamic_rotate %44 by %c124_i32 dim 1 : vector<16x128xf32>, i32 -> vector<16x128xf32>
    %c0_i32_72 = arith.constant 0 : i32
    %184 = vector.broadcast %c0_i32_72 : i32 to vector<16x128xi32>
    %185 = arith.cmpi sge, %45, %184 : vector<16x128xi32>
    %c124_i32_73 = arith.constant 124 : i32
    %186 = vector.broadcast %c124_i32_73 : i32 to vector<16x128xi32>
    %187 = arith.cmpi slt, %45, %186 : vector<16x128xi32>
    %188 = arith.andi %185, %187 : vector<16x128xi1>
    %cst_74 = arith.constant 0.000000e+00 : f32
    %189 = vector.broadcast %cst_74 : f32 to vector<16x128xf32>
    %190 = arith.select %188, %183, %189 : vector<16x128xi1>, vector<16x128xf32>
    %c0_75 = arith.constant 0 : index
    %c8 = arith.constant 8 : index
    %191 = memref.load %arg8[%c0_75, %c8] : memref<2x9xf32, #tpu.memory_space<smem>>
    %192 = vector.extract_strided_slice %190 {offsets = [0, 0], sizes = [8, 128], strides = [1, 1]} : vector<16x128xf32> to vector<8x128xf32>
    %193 = vector.broadcast %191 : f32 to vector<8x128xf32>
    %194 = arith.mulf %193, %192 : vector<8x128xf32>
    %195 = arith.addf %182, %194 : vector<8x128xf32>
    %c1_76 = arith.constant 1 : index
    %c8_77 = arith.constant 8 : index
    %196 = memref.load %arg8[%c1_76, %c8_77] : memref<2x9xf32, #tpu.memory_space<smem>>
    %197 = vector.extract_strided_slice %190 {offsets = [8, 0], sizes = [8, 128], strides = [1, 1]} : vector<16x128xf32> to vector<8x128xf32>
    %198 = vector.broadcast %196 : f32 to vector<8x128xf32>
    %199 = arith.mulf %198, %197 : vector<8x128xf32>
    %200 = arith.addf %195, %199 : vector<8x128xf32>
    %201 = arith.negf %200 : vector<8x128xf32>
    %202 = math.exp %201 : vector<8x128xf32>
    %cst_78 = arith.constant 1.000000e+00 : f32
    %203 = vector.broadcast %cst_78 : f32 to vector<8x128xf32>
    %204 = arith.addf %203, %202 : vector<8x128xf32>
    %205 = arith.divf %203, %204 : vector<8x128xf32>
    %206 = tpu.iota {dimensions = array<i32: 1>} : vector<8x128xi32>
    %cst_79 = arith.constant 0.000000e+00 : f32
    %207 = vector.broadcast %cst_79 : f32 to vector<8x128xf32>
    %c3_i32_80 = arith.constant 3 : i32
    %208 = tpu.dynamic_rotate %205 by %c3_i32_80 dim 1 : vector<8x128xf32>, i32 -> vector<8x128xf32>
    %c3_i32_81 = arith.constant 3 : i32
    %209 = vector.broadcast %c3_i32_81 : i32 to vector<8x128xi32>
    %210 = arith.cmpi sge, %206, %209 : vector<8x128xi32>
    %c128_i32_82 = arith.constant 128 : i32
    %211 = vector.broadcast %c128_i32_82 : i32 to vector<8x128xi32>
    %212 = arith.cmpi slt, %206, %211 : vector<8x128xi32>
    %213 = arith.andi %210, %212 : vector<8x128xi1>
    %cst_83 = arith.constant 0.000000e+00 : f32
    %214 = vector.broadcast %cst_83 : f32 to vector<8x128xf32>
    %215 = arith.select %213, %208, %214 : vector<8x128xi1>, vector<8x128xf32>
    %c0_84 = arith.constant 0 : index
    %c0_85 = arith.constant 0 : index
    %216 = memref.load %arg9[%c0_84, %c0_85] : memref<1x7xf32, #tpu.memory_space<smem>>
    %217 = vector.broadcast %216 : f32 to vector<8x128xf32>
    %218 = arith.mulf %217, %215 : vector<8x128xf32>
    %219 = arith.addf %207, %218 : vector<8x128xf32>
    %c2_i32_86 = arith.constant 2 : i32
    %220 = tpu.dynamic_rotate %205 by %c2_i32_86 dim 1 : vector<8x128xf32>, i32 -> vector<8x128xf32>
    %c2_i32_87 = arith.constant 2 : i32
    %221 = vector.broadcast %c2_i32_87 : i32 to vector<8x128xi32>
    %222 = arith.cmpi sge, %206, %221 : vector<8x128xi32>
    %c128_i32_88 = arith.constant 128 : i32
    %223 = vector.broadcast %c128_i32_88 : i32 to vector<8x128xi32>
    %224 = arith.cmpi slt, %206, %223 : vector<8x128xi32>
    %225 = arith.andi %222, %224 : vector<8x128xi1>
    %cst_89 = arith.constant 0.000000e+00 : f32
    %226 = vector.broadcast %cst_89 : f32 to vector<8x128xf32>
    %227 = arith.select %225, %220, %226 : vector<8x128xi1>, vector<8x128xf32>
    %c0_90 = arith.constant 0 : index
    %c1_91 = arith.constant 1 : index
    %228 = memref.load %arg9[%c0_90, %c1_91] : memref<1x7xf32, #tpu.memory_space<smem>>
    %229 = vector.broadcast %228 : f32 to vector<8x128xf32>
    %230 = arith.mulf %229, %227 : vector<8x128xf32>
    %231 = arith.addf %219, %230 : vector<8x128xf32>
    %c1_i32_92 = arith.constant 1 : i32
    %232 = tpu.dynamic_rotate %205 by %c1_i32_92 dim 1 : vector<8x128xf32>, i32 -> vector<8x128xf32>
    %c1_i32_93 = arith.constant 1 : i32
    %233 = vector.broadcast %c1_i32_93 : i32 to vector<8x128xi32>
    %234 = arith.cmpi sge, %206, %233 : vector<8x128xi32>
    %c128_i32_94 = arith.constant 128 : i32
    %235 = vector.broadcast %c128_i32_94 : i32 to vector<8x128xi32>
    %236 = arith.cmpi slt, %206, %235 : vector<8x128xi32>
    %237 = arith.andi %234, %236 : vector<8x128xi1>
    %cst_95 = arith.constant 0.000000e+00 : f32
    %238 = vector.broadcast %cst_95 : f32 to vector<8x128xf32>
    %239 = arith.select %237, %232, %238 : vector<8x128xi1>, vector<8x128xf32>
    %c0_96 = arith.constant 0 : index
    %c2_97 = arith.constant 2 : index
    %240 = memref.load %arg9[%c0_96, %c2_97] : memref<1x7xf32, #tpu.memory_space<smem>>
    %241 = vector.broadcast %240 : f32 to vector<8x128xf32>
    %242 = arith.mulf %241, %239 : vector<8x128xf32>
    %243 = arith.addf %231, %242 : vector<8x128xf32>
    %c0_98 = arith.constant 0 : index
    %c3_99 = arith.constant 3 : index
    %244 = memref.load %arg9[%c0_98, %c3_99] : memref<1x7xf32, #tpu.memory_space<smem>>
    %245 = vector.broadcast %244 : f32 to vector<8x128xf32>
    %246 = arith.mulf %245, %205 : vector<8x128xf32>
    %247 = arith.addf %243, %246 : vector<8x128xf32>
    %c127_i32_100 = arith.constant 127 : i32
    %248 = tpu.dynamic_rotate %205 by %c127_i32_100 dim 1 : vector<8x128xf32>, i32 -> vector<8x128xf32>
    %c0_i32_101 = arith.constant 0 : i32
    %249 = vector.broadcast %c0_i32_101 : i32 to vector<8x128xi32>
    %250 = arith.cmpi sge, %206, %249 : vector<8x128xi32>
    %c127_i32_102 = arith.constant 127 : i32
    %251 = vector.broadcast %c127_i32_102 : i32 to vector<8x128xi32>
    %252 = arith.cmpi slt, %206, %251 : vector<8x128xi32>
    %253 = arith.andi %250, %252 : vector<8x128xi1>
    %cst_103 = arith.constant 0.000000e+00 : f32
    %254 = vector.broadcast %cst_103 : f32 to vector<8x128xf32>
    %255 = arith.select %253, %248, %254 : vector<8x128xi1>, vector<8x128xf32>
    %c0_104 = arith.constant 0 : index
    %c4_105 = arith.constant 4 : index
    %256 = memref.load %arg9[%c0_104, %c4_105] : memref<1x7xf32, #tpu.memory_space<smem>>
    %257 = vector.broadcast %256 : f32 to vector<8x128xf32>
    %258 = arith.mulf %257, %255 : vector<8x128xf32>
    %259 = arith.addf %247, %258 : vector<8x128xf32>
    %c126_i32_106 = arith.constant 126 : i32
    %260 = tpu.dynamic_rotate %205 by %c126_i32_106 dim 1 : vector<8x128xf32>, i32 -> vector<8x128xf32>
    %c0_i32_107 = arith.constant 0 : i32
    %261 = vector.broadcast %c0_i32_107 : i32 to vector<8x128xi32>
    %262 = arith.cmpi sge, %206, %261 : vector<8x128xi32>
    %c126_i32_108 = arith.constant 126 : i32
    %263 = vector.broadcast %c126_i32_108 : i32 to vector<8x128xi32>
    %264 = arith.cmpi slt, %206, %263 : vector<8x128xi32>
    %265 = arith.andi %262, %264 : vector<8x128xi1>
    %cst_109 = arith.constant 0.000000e+00 : f32
    %266 = vector.broadcast %cst_109 : f32 to vector<8x128xf32>
    %267 = arith.select %265, %260, %266 : vector<8x128xi1>, vector<8x128xf32>
    %c0_110 = arith.constant 0 : index
    %c5_111 = arith.constant 5 : index
    %268 = memref.load %arg9[%c0_110, %c5_111] : memref<1x7xf32, #tpu.memory_space<smem>>
    %269 = vector.broadcast %268 : f32 to vector<8x128xf32>
    %270 = arith.mulf %269, %267 : vector<8x128xf32>
    %271 = arith.addf %259, %270 : vector<8x128xf32>
    %c125_i32_112 = arith.constant 125 : i32
    %272 = tpu.dynamic_rotate %205 by %c125_i32_112 dim 1 : vector<8x128xf32>, i32 -> vector<8x128xf32>
    %c0_i32_113 = arith.constant 0 : i32
    %273 = vector.broadcast %c0_i32_113 : i32 to vector<8x128xi32>
    %274 = arith.cmpi sge, %206, %273 : vector<8x128xi32>
    %c125_i32_114 = arith.constant 125 : i32
    %275 = vector.broadcast %c125_i32_114 : i32 to vector<8x128xi32>
    %276 = arith.cmpi slt, %206, %275 : vector<8x128xi32>
    %277 = arith.andi %274, %276 : vector<8x128xi1>
    %cst_115 = arith.constant 0.000000e+00 : f32
    %278 = vector.broadcast %cst_115 : f32 to vector<8x128xf32>
    %279 = arith.select %277, %272, %278 : vector<8x128xi1>, vector<8x128xf32>
    %c0_116 = arith.constant 0 : index
    %c6_117 = arith.constant 6 : index
    %280 = memref.load %arg9[%c0_116, %c6_117] : memref<1x7xf32, #tpu.memory_space<smem>>
    %281 = vector.broadcast %280 : f32 to vector<8x128xf32>
    %282 = arith.mulf %281, %279 : vector<8x128xf32>
    %283 = arith.addf %271, %282 : vector<8x128xf32>
    %c0_118 = arith.constant 0 : index
    %c0_119 = arith.constant 0 : index
    %284 = memref.load %arg10[%c0_118, %c0_119] : memref<1x1xf32, #tpu.memory_space<smem>>
    %285 = vector.broadcast %284 : f32 to vector<8x128xf32>
    %286 = arith.addf %283, %285 : vector<8x128xf32>
    %287 = arith.negf %286 : vector<8x128xf32>
    %288 = math.exp %287 : vector<8x128xf32>
    %cst_120 = arith.constant 1.000000e+00 : f32
    %289 = vector.broadcast %cst_120 : f32 to vector<8x128xf32>
    %290 = arith.addf %289, %288 : vector<8x128xf32>
    %291 = arith.divf %289, %290 : vector<8x128xf32>
    %292 = vector.shape_cast %291 : vector<8x128xf32> to vector<8x1x128xf32>
    %293 = vector.broadcast %292 : vector<8x1x128xf32> to vector<8x32x128xf32>
    %294 = arith.mulf %293, %39 : vector<8x32x128xf32>
    %c0_121 = arith.constant 0 : index
    %c0_122 = arith.constant 0 : index
    %c0_123 = arith.constant 0 : index
    %295 = vector.load %arg11[%c0_121, %c0_122, %c0_123] : memref<8x32x128xf32, #tpu.memory_space<vmem>>, vector<8x32x128xf32>
    tpu.vector_store %arg11[%c0_121, %c0_122, %c0_123], %294 {strides = array<i32>} : memref<8x32x128xf32, #tpu.memory_space<vmem>>, vector<8x32x128xf32>,
    return
  }
  func.func @transform_0(%arg0: i32) -> (i32, i32, i32) {
    %c0_i32 = arith.constant 0 : i32
    %c0_i32_0 = arith.constant 0 : i32
    %c0_i32_1 = arith.constant 0 : i32
    return %arg0, %c0_i32, %c0_i32_0 : i32, i32, i32
  }
  func.func @transform_1(%arg0: i32) -> (i32, i32) {
    %c0_i32 = arith.constant 0 : i32
    %c0_i32_0 = arith.constant 0 : i32
    %c0_i32_1 = arith.constant 0 : i32
    return %c0_i32, %c0_i32_0 : i32, i32
  }
  func.func @transform_2(%arg0: i32) -> (i32, i32) {
    %c0_i32 = arith.constant 0 : i32
    %c0_i32_0 = arith.constant 0 : i32
    %c0_i32_1 = arith.constant 0 : i32
    return %c0_i32, %c0_i32_0 : i32, i32
  }
  func.func @transform_3(%arg0: i32) -> (i32, i32) {
    %c0_i32 = arith.constant 0 : i32
    %c0_i32_0 = arith.constant 0 : i32
    %c0_i32_1 = arith.constant 0 : i32
    return %c0_i32, %c0_i32_0 : i32, i32
  }
  func.func @transform_4(%arg0: i32) -> (i32, i32) {
    %c0_i32 = arith.constant 0 : i32
    %c0_i32_0 = arith.constant 0 : i32
    %c0_i32_1 = arith.constant 0 : i32
    return %c0_i32, %c0_i32_0 : i32, i32
  }
  func.func @transform_5(%arg0: i32) -> (i32, i32) {
    %c0_i32 = arith.constant 0 : i32
    %c0_i32_0 = arith.constant 0 : i32
    %c0_i32_1 = arith.constant 0 : i32
    return %c0_i32, %c0_i32_0 : i32, i32
  }
  func.func @transform_6(%arg0: i32) -> (i32, i32) {
    %c0_i32 = arith.constant 0 : i32
    %c0_i32_0 = arith.constant 0 : i32
    %c0_i32_1 = arith.constant 0 : i32
    return %c0_i32, %c0_i32_0 : i32, i32
  }
  func.func @transform_7(%arg0: i32) -> (i32, i32) {
    %c0_i32 = arith.constant 0 : i32
    %c0_i32_0 = arith.constant 0 : i32
    %c0_i32_1 = arith.constant 0 : i32
    return %c0_i32, %c0_i32_0 : i32, i32
  }
  func.func @transform_8(%arg0: i32) -> (i32, i32) {
    %c0_i32 = arith.constant 0 : i32
    %c0_i32_0 = arith.constant 0 : i32
    %c0_i32_1 = arith.constant 0 : i32
    return %c0_i32, %c0_i32_0 : i32, i32
  }
  func.func @transform_9(%arg0: i32) -> (i32, i32) {
    %c0_i32 = arith.constant 0 : i32
    %c0_i32_0 = arith.constant 0 : i32
    %c0_i32_1 = arith.constant 0 : i32
    return %c0_i32, %c0_i32_0 : i32, i32
  }
  func.func @transform_10(%arg0: i32) -> (i32, i32, i32) {
    %c0_i32 = arith.constant 0 : i32
    %c0_i32_0 = arith.constant 0 : i32
    %c0_i32_1 = arith.constant 0 : i32
    return %arg0, %c0_i32, %c0_i32_0 : i32, i32, i32
  }
}

</mosaic_0001>

<llo_original>
// kernel: tpu_custom_call.1
$region0: #{tpu_custom_call.1}
  #allocation0 [shape = 'u32[]', space=smem, size = 0x4, offset = 0x4, fixed_abs, tag = 'smem constant byte address 0x4 - core index']
  #allocation1 [shape = 'u32[144,128]{1,0:T(1,128)}', space=vmem, size = 0x12000, scoped, tag = 'internal scratch']
  #allocation2 [shape = 'f32[1,1]{1,0:T(1,128)S(6)}', space=smem, size = 0x200, scoped, tag = 'scoped memory for tpu_custom_call.1']
  %s0 = inlined_call_operand.hbm [shape: f32[8,32,128], index: 0, kind: input, shape index: {}]
  %s1 = inlined_call_operand.vmem [shape: f32[32,2], index: 1, kind: input, shape index: {}]
  %s2 = inlined_call_operand.vmem [shape: f32[2,32], index: 2, kind: input, shape index: {}]
  %s3 = inlined_call_operand.vmem [shape: f32[32,16], index: 3, kind: input, shape index: {}]
  %s4 = inlined_call_operand.vmem [shape: f32[1,16], index: 4, kind: input, shape index: {}]
  %s5 = inlined_call_operand.vmem [shape: f32[16,32], index: 5, kind: input, shape index: {}]
  %s6 = inlined_call_operand.vmem [shape: f32[1,32], index: 6, kind: input, shape index: {}]
  %s7 = inlined_call_operand.vmem [shape: f32[2,9], index: 7, kind: input, shape index: {}]
  %s8 = inlined_call_operand.vmem [shape: f32[1,7], index: 8, kind: input, shape index: {}]
  %s9 = inlined_call_operand.<no memory space> [shape: f32[1,1], index: 9, kind: input, shape index: {}]
  %s10 = inlined_call_operand.hbm [shape: f32[8,32,128], index: 10, kind: output, shape index: {}]
  %s11 = sld [smem:[#allocation0]]
  $region62: #{tpu_custom_call.1} parent=0
    _
  %s13 = ssub.s32 1, %s11
  %s14 = scalar_select 0, %s13, %s11
  %15 = sst [smem:[#allocation2]] %s9
  $region1: #{tpu_custom_call.1} parent=0
    #allocation3 [shape = 'u8[131072]{0}', space=vmem, size = 0x20000, scoped, tag = 'input window, operand 0, single buffered']
    #allocation4 [shape = 's32[1]{0}', space=sflag, size = 0x4, scoped, tag = 'scoped memory for tpu_custom_call.1']
    #allocation5 [shape = 's32[1]{0}', space=sflag, size = 0x4, scoped, tag = 'scoped memory for tpu_custom_call.1']
    #allocation6 [shape = 's32[1]{0}', space=sflag, size = 0x4, scoped, tag = 'scoped memory for tpu_custom_call.1']
    #allocation7 [shape = 'u8[1024]{0}', space=smem, size = 0x400, scoped, tag = 'input window, operand 7, single buffered']
    #allocation8 [shape = 'u8[512]{0}', space=smem, size = 0x200, scoped, tag = 'input window, operand 8, single buffered']
    #allocation9 [shape = 's32[1]{0}', space=sflag, size = 0x4, scoped, tag = 'scoped memory for tpu_custom_call.1']
    #allocation10 [shape = 'u8[131072]{0}', space=vmem, size = 0x20000, scoped, tag = 'output window, operand 0, single buffered']
    %16 = vsyncpa [#allocation4], 0
    %17 = vsyncpa [#allocation6], 0
    %18 = vsyncpa [#allocation9], 0
    %19 = vsyncpa [#allocation5], 0
    // Predicated region
    $region2: #{tpu_custom_call.1} parent=1 // pred_check
      _
    $region3: #{tpu_custom_call.1} parent=1 // pred_check_branch
      %21 = sbr.rel (0) target = $region5
    $region4: #{tpu_custom_call.1} parent=1 // pred_region
      %s23 = ssub.s32 4096, 4096
      %24 = vsyncadd [#allocation4], %s23
      %s25 = sshll.u32 [#allocation3], 4
      %s26 = int_to_ptr.vmem [resolvable:$true] %s25
      %31 = dma.hbm_to_vmem [thread:$0]  %s0, 4096, %s26, [#allocation4], 128, 128, 8
    $region5: #{tpu_custom_call.1} parent=1 // pred_fallthru
      _
    // Predicated region
    $region6: #{tpu_custom_call.1} parent=1 // pred_check
      _
    $region7: #{tpu_custom_call.1} parent=1 // pred_check_branch
      %33 = sbr.rel (0) target = $region9
    $region8: #{tpu_custom_call.1} parent=1 // pred_region
      _
    $region9: #{tpu_custom_call.1} parent=1 // pred_fallthru
      _
    // Predicated region
    $region10: #{tpu_custom_call.1} parent=1 // pred_check
      _
    $region11: #{tpu_custom_call.1} parent=1 // pred_check_branch
      %35 = sbr.rel (0) target = $region13
    $region12: #{tpu_custom_call.1} parent=1 // pred_region
      _
    $region13: #{tpu_custom_call.1} parent=1 // pred_fallthru
      _
    // Predicated region
    $region14: #{tpu_custom_call.1} parent=1 // pred_check
      _
    $region15: #{tpu_custom_call.1} parent=1 // pred_check_branch
      %37 = sbr.rel (0) target = $region17
    $region16: #{tpu_custom_call.1} parent=1 // pred_region
      _
    $region17: #{tpu_custom_call.1} parent=1 // pred_fallthru
      _
    // Predicated region
    $region18: #{tpu_custom_call.1} parent=1 // pred_check
      _
    $region19: #{tpu_custom_call.1} parent=1 // pred_check_branch
      %39 = sbr.rel (0) target = $region21
    $region20: #{tpu_custom_call.1} parent=1 // pred_region
      _
    $region21: #{tpu_custom_call.1} parent=1 // pred_fallthru
      _
    // Predicated region
    $region22: #{tpu_custom_call.1} parent=1 // pred_check
      _
    $region23: #{tpu_custom_call.1} parent=1 // pred_check_branch
      %41 = sbr.rel (0) target = $region25
    $region24: #{tpu_custom_call.1} parent=1 // pred_region
      _
    $region25: #{tpu_custom_call.1} parent=1 // pred_fallthru
      _
    // Predicated region
    $region26: #{tpu_custom_call.1} parent=1 // pred_check
      _
    $region27: #{tpu_custom_call.1} parent=1 // pred_check_branch
      %43 = sbr.rel (0) target = $region29
    $region28: #{tpu_custom_call.1} parent=1 // pred_region
      _
    $region29: #{tpu_custom_call.1} parent=1 // pred_fallthru
      _
    // Predicated region
    $region30: #{tpu_custom_call.1} parent=1 // pred_check
      _
    $region31: #{tpu_custom_call.1} parent=1 // pred_check_branch
      %45 = sbr.rel (0) target = $region33
    $region32: #{tpu_custom_call.1} parent=1 // pred_region
      %s47 = ssub.s32 32, 32
      %48 = vsyncadd [#allocation6], %s47
      %s50 = sshll.u32 %s7, 4
      %s51 = int_to_ptr.vmem [resolvable:$true] %s50
      %53 = dma.vmem_to_smem %s51, 32, [#allocation7], [#allocation6]
    $region33: #{tpu_custom_call.1} parent=1 // pred_fallthru
      _
    // Predicated region
    $region34: #{tpu_custom_call.1} parent=1 // pred_check
      _
    $region35: #{tpu_custom_call.1} parent=1 // pred_check_branch
      %55 = sbr.rel (0) target = $region37
    $region36: #{tpu_custom_call.1} parent=1 // pred_region
      %s57 = ssub.s32 16, 16
      %58 = vsyncadd [#allocation9], %s57
      %s60 = sshll.u32 %s8, 4
      %s61 = int_to_ptr.vmem [resolvable:$true] %s60
      %63 = dma.vmem_to_smem %s61, 16, [#allocation8], [#allocation9]
    $region37: #{tpu_custom_call.1} parent=1 // pred_fallthru
      _
    // Predicated region
    $region38: #{tpu_custom_call.1} parent=1 // pred_check
      _
    $region39: #{tpu_custom_call.1} parent=1 // pred_check_branch
      %65 = sbr.rel (0) target = $region41
    $region40: #{tpu_custom_call.1} parent=1 // pred_region
      _
    $region41: #{tpu_custom_call.1} parent=1 // pred_fallthru
      _
    // Predicated region
    $region42: #{tpu_custom_call.1} parent=1 // pred_check
      _
    $region43: #{tpu_custom_call.1} parent=1 // pred_check_branch
      %67 = sbr.rel (0) target = $region45
    $region44: #{tpu_custom_call.1} parent=1 // pred_region
      %68 = dma.done [#allocation4], 4096
    $region45: #{tpu_custom_call.1} parent=1 // pred_fallthru
      _
    // Predicated region
    $region46: #{tpu_custom_call.1} parent=1 // pred_check
      _
    $region47: #{tpu_custom_call.1} parent=1 // pred_check_branch
      %70 = sbr.rel (0) target = $region49
    $region48: #{tpu_custom_call.1} parent=1 // pred_region
      %71 = dma.done [#allocation6], 32
    $region49: #{tpu_custom_call.1} parent=1 // pred_fallthru
      _
    // Predicated region
    $region50: #{tpu_custom_call.1} parent=1 // pred_check
      _
    $region51: #{tpu_custom_call.1} parent=1 // pred_check_branch
      %73 = sbr.rel (0) target = $region53
    $region52: #{tpu_custom_call.1} parent=1 // pred_region
      %74 = dma.done [#allocation9], 16
    $region53: #{tpu_custom_call.1} parent=1 // pred_fallthru
      _
    %75 = sfence
    %v76 = vld [vmem:[#allocation3] sm:$0xff]
    %v77 = vld [vmem:[#allocation3 + $0x8] sm:$0xff]
    %v78 = vld [vmem:[#allocation3 + $0x10] sm:$0xff]
    %v79 = vld [vmem:[#allocation3 + $0x18] sm:$0xff]
    %v80 = vld [vmem:[#allocation3 + $0x20] sm:$0xff]
    %v81 = vld [vmem:[#allocation3 + $0x28] sm:$0xff]
    %v82 = vld [vmem:[#allocation3 + $0x30] sm:$0xff]
    %v83 = vld [vmem:[#allocation3 + $0x38] sm:$0xff]
    %v84 = vld [vmem:[#allocation3 + $0x40] sm:$0xff]
    %v85 = vld [vmem:[#allocation3 + $0x48] sm:$0xff]
    %v86 = vld [vmem:[#allocation3 + $0x50] sm:$0xff]
    %v87 = vld [vmem:[#allocation3 + $0x58] sm:$0xff]
    %v88 = vld [vmem:[#allocation3 + $0x60] sm:$0xff]
    %v89 = vld [vmem:[#allocation3 + $0x68] sm:$0xff]
    %v90 = vld [vmem:[#allocation3 + $0x70] sm:$0xff]
    %v91 = vld [vmem:[#allocation3 + $0x78] sm:$0xff]
    %v92 = vld [vmem:[#allocation3 + $0x80] sm:$0xff]
    %v93 = vld [vmem:[#allocation3 + $0x88] sm:$0xff]
    %v94 = vld [vmem:[#allocation3 + $0x90] sm:$0xff]
    %v95 = vld [vmem:[#allocation3 + $0x98] sm:$0xff]
    %v96 = vld [vmem:[#allocation3 + $0xa0] sm:$0xff]
    %v97 = vld [vmem:[#allocation3 + $0xa8] sm:$0xff]
    %v98 = vld [vmem:[#allocation3 + $0xb0] sm:$0xff]
    %v99 = vld [vmem:[#allocation3 + $0xb8] sm:$0xff]
    %v100 = vld [vmem:[#allocation3 + $0xc0] sm:$0xff]
    %v101 = vld [vmem:[#allocation3 + $0xc8] sm:$0xff]
    %v102 = vld [vmem:[#allocation3 + $0xd0] sm:$0xff]
    %v103 = vld [vmem:[#allocation3 + $0xd8] sm:$0xff]
    %v104 = vld [vmem:[#allocation3 + $0xe0] sm:$0xff]
    %v105 = vld [vmem:[#allocation3 + $0xe8] sm:$0xff]
    %v106 = vld [vmem:[#allocation3 + $0xf0] sm:$0xff]
    %v107 = vld [vmem:[#allocation3 + $0xf8] sm:$0xff]
    %108 = vmax.xlane.f32.xlu0 %v76
    %v109 = vpop.xlane.xlu0 %108
    %110 = vmax.xlane.f32.xlu0 %v77
    %v111 = vpop.xlane.xlu0 %110
    %112 = vmax.xlane.f32.xlu0 %v78
    %v113 = vpop.xlane.xlu0 %112
    %114 = vmax.xlane.f32.xlu0 %v79
    %v115 = vpop.xlane.xlu0 %114
    %116 = vmax.xlane.f32.xlu0 %v80
    %v117 = vpop.xlane.xlu0 %116
    %118 = vmax.xlane.f32.xlu0 %v81
    %v119 = vpop.xlane.xlu0 %118
    %120 = vmax.xlane.f32.xlu0 %v82
    %v121 = vpop.xlane.xlu0 %120
    %122 = vmax.xlane.f32.xlu0 %v83
    %v123 = vpop.xlane.xlu0 %122
    %124 = vmax.xlane.f32.xlu0 %v84
    %v125 = vpop.xlane.xlu0 %124
    %126 = vmax.xlane.f32.xlu0 %v85
    %v127 = vpop.xlane.xlu0 %126
    %128 = vmax.xlane.f32.xlu0 %v86
    %v129 = vpop.xlane.xlu0 %128
    %130 = vmax.xlane.f32.xlu0 %v87
    %v131 = vpop.xlane.xlu0 %130
    %132 = vmax.xlane.f32.xlu0 %v88
    %v133 = vpop.xlane.xlu0 %132
    %134 = vmax.xlane.f32.xlu0 %v89
    %v135 = vpop.xlane.xlu0 %134
    %136 = vmax.xlane.f32.xlu0 %v90
    %v137 = vpop.xlane.xlu0 %136
    %138 = vmax.xlane.f32.xlu0 %v91
    %v139 = vpop.xlane.xlu0 %138
    %140 = vmax.xlane.f32.xlu0 %v92
    %v141 = vpop.xlane.xlu0 %140
    %142 = vmax.xlane.f32.xlu0 %v93
    %v143 = vpop.xlane.xlu0 %142
    %144 = vmax.xlane.f32.xlu0 %v94
    %v145 = vpop.xlane.xlu0 %144
    %146 = vmax.xlane.f32.xlu0 %v95
    %v147 = vpop.xlane.xlu0 %146
    %148 = vmax.xlane.f32.xlu0 %v96
    %v149 = vpop.xlane.xlu0 %148
    %150 = vmax.xlane.f32.xlu0 %v97
    %v151 = vpop.xlane.xlu0 %150
    %152 = vmax.xlane.f32.xlu0 %v98
    %v153 = vpop.xlane.xlu0 %152
    %154 = vmax.xlane.f32.xlu0 %v99
    %v155 = vpop.xlane.xlu0 %154
    %156 = vmax.xlane.f32.xlu0 %v100
    %v157 = vpop.xlane.xlu0 %156
    %158 = vmax.xlane.f32.xlu0 %v101
    %v159 = vpop.xlane.xlu0 %158
    %160 = vmax.xlane.f32.xlu0 %v102
    %v161 = vpop.xlane.xlu0 %160
    %162 = vmax.xlane.f32.xlu0 %v103
    %v163 = vpop.xlane.xlu0 %162
    %164 = vmax.xlane.f32.xlu0 %v104
    %v165 = vpop.xlane.xlu0 %164
    %166 = vmax.xlane.f32.xlu0 %v105
    %v167 = vpop.xlane.xlu0 %166
    %168 = vmax.xlane.f32.xlu0 %v106
    %v169 = vpop.xlane.xlu0 %168
    %170 = vmax.xlane.f32.xlu0 %v107
    %v171 = vpop.xlane.xlu0 %170
    %172 = vadd.xlane.f32.xlu0 %v76
    %v173 = vpop.xlane.xlu0 %172
    %174 = vadd.xlane.f32.xlu0 %v77
    %v175 = vpop.xlane.xlu0 %174
    %176 = vadd.xlane.f32.xlu0 %v78
    %v177 = vpop.xlane.xlu0 %176
    %178 = vadd.xlane.f32.xlu0 %v79
    %v179 = vpop.xlane.xlu0 %178
    %180 = vadd.xlane.f32.xlu0 %v80
    %v181 = vpop.xlane.xlu0 %180
    %182 = vadd.xlane.f32.xlu0 %v81
    %v183 = vpop.xlane.xlu0 %182
    %184 = vadd.xlane.f32.xlu0 %v82
    %v185 = vpop.xlane.xlu0 %184
    %186 = vadd.xlane.f32.xlu0 %v83
    %v187 = vpop.xlane.xlu0 %186
    %188 = vadd.xlane.f32.xlu0 %v84
    %v189 = vpop.xlane.xlu0 %188
    %190 = vadd.xlane.f32.xlu0 %v85
    %v191 = vpop.xlane.xlu0 %190
    %192 = vadd.xlane.f32.xlu0 %v86
    %v193 = vpop.xlane.xlu0 %192
    %194 = vadd.xlane.f32.xlu0 %v87
    %v195 = vpop.xlane.xlu0 %194
    %196 = vadd.xlane.f32.xlu0 %v88
    %v197 = vpop.xlane.xlu0 %196
    %198 = vadd.xlane.f32.xlu0 %v89
    %v199 = vpop.xlane.xlu0 %198
    %200 = vadd.xlane.f32.xlu0 %v90
    %v201 = vpop.xlane.xlu0 %200
    %202 = vadd.xlane.f32.xlu0 %v91
    %v203 = vpop.xlane.xlu0 %202
    %204 = vadd.xlane.f32.xlu0 %v92
    %v205 = vpop.xlane.xlu0 %204
    %206 = vadd.xlane.f32.xlu0 %v93
    %v207 = vpop.xlane.xlu0 %206
    %208 = vadd.xlane.f32.xlu0 %v94
    %v209 = vpop.xlane.xlu0 %208
    %210 = vadd.xlane.f32.xlu0 %v95
    %v211 = vpop.xlane.xlu0 %210
    %212 = vadd.xlane.f32.xlu0 %v96
    %v213 = vpop.xlane.xlu0 %212
    %214 = vadd.xlane.f32.xlu0 %v97
    %v215 = vpop.xlane.xlu0 %214
    %216 = vadd.xlane.f32.xlu0 %v98
    %v217 = vpop.xlane.xlu0 %216
    %218 = vadd.xlane.f32.xlu0 %v99
    %v219 = vpop.xlane.xlu0 %218
    %220 = vadd.xlane.f32.xlu0 %v100
    %v221 = vpop.xlane.xlu0 %220
    %222 = vadd.xlane.f32.xlu0 %v101
    %v223 = vpop.xlane.xlu0 %222
    %224 = vadd.xlane.f32.xlu0 %v102
    %v225 = vpop.xlane.xlu0 %224
    %226 = vadd.xlane.f32.xlu0 %v103
    %v227 = vpop.xlane.xlu0 %226
    %228 = vadd.xlane.f32.xlu0 %v104
    %v229 = vpop.xlane.xlu0 %228
    %230 = vadd.xlane.f32.xlu0 %v105
    %v231 = vpop.xlane.xlu0 %230
    %232 = vadd.xlane.f32.xlu0 %v106
    %v233 = vpop.xlane.xlu0 %232
    %234 = vadd.xlane.f32.xlu0 %v107
    %v235 = vpop.xlane.xlu0 %234
    %v236 = vrcp.pop 128.0
    %v237 = vmul.f32 %v173, %v236
    %v238 = vmul.f32 %v175, %v236
    %v239 = vmul.f32 %v177, %v236
    %v240 = vmul.f32 %v179, %v236
    %v241 = vmul.f32 %v181, %v236
    %v242 = vmul.f32 %v183, %v236
    %v243 = vmul.f32 %v185, %v236
    %v244 = vmul.f32 %v187, %v236
    %v245 = vmul.f32 %v189, %v236
    %v246 = vmul.f32 %v191, %v236
    %v247 = vmul.f32 %v193, %v236
    %v248 = vmul.f32 %v195, %v236
    %v249 = vmul.f32 %v197, %v236
    %v250 = vmul.f32 %v199, %v236
    %v251 = vmul.f32 %v201, %v236
    %v252 = vmul.f32 %v203, %v236
    %v253 = vmul.f32 %v205, %v236
    %v254 = vmul.f32 %v207, %v236
    %v255 = vmul.f32 %v209, %v236
    %v256 = vmul.f32 %v211, %v236
    %v257 = vmul.f32 %v213, %v236
    %v258 = vmul.f32 %v215, %v236
    %v259 = vmul.f32 %v217, %v236
    %v260 = vmul.f32 %v219, %v236
    %v261 = vmul.f32 %v221, %v236
    %v262 = vmul.f32 %v223, %v236
    %v263 = vmul.f32 %v225, %v236
    %v264 = vmul.f32 %v227, %v236
    %v265 = vmul.f32 %v229, %v236
    %v266 = vmul.f32 %v231, %v236
    %v267 = vmul.f32 %v233, %v236
    %v268 = vmul.f32 %v235, %v236
    %v301 = vlaneseq
    %v302 = vand.u32 %v301, 127
    %v303 = vlaneseq
    %v304 = vshrl.u32 %v303, 7
    %v305 = vsub.s32 %v302, %v304
    %v306 = vrot.slane %v109, %v305
    %v307 = vadd.s32 %v302, 4294967288
    %v308 = vlaneseq
    %v309 = vshrl.u32 %v308, 7
    %v310 = vsub.s32 %v307, %v309
    %v311 = vrot.slane %v111, %v310
    %vm312 = vcmask 130112
    %v313 = vsel %vm312, %v311, %v306
    %v314 = vadd.s32 %v302, 4294967280
    %v315 = vlaneseq
    %v316 = vshrl.u32 %v315, 7
    %v317 = vsub.s32 %v314, %v316
    %v318 = vrot.slane %v113, %v317
    %vm319 = vcmask 195712
    %v320 = vsel %vm319, %v318, %v313
    %v321 = vadd.s32 %v302, 4294967272
    %v322 = vlaneseq
    %v323 = vshrl.u32 %v322, 7
    %v324 = vsub.s32 %v321, %v323
    %v325 = vrot.slane %v115, %v324
    %vm326 = vcmask 261312
    %v327 = vsel %vm326, %v325, %v320
    %v328 = vlaneseq
    %v329 = vshrl.u32 %v328, 7
    %v330 = vsub.s32 %v302, %v329
    %v331 = vrot.slane %v117, %v330
    %v332 = vlaneseq
    %v333 = vshrl.u32 %v332, 7
    %v334 = vsub.s32 %v307, %v333
    %v335 = vrot.slane %v119, %v334
    %v336 = vsel %vm312, %v335, %v331
    %v337 = vlaneseq
    %v338 = vshrl.u32 %v337, 7
    %v339 = vsub.s32 %v314, %v338
    %v340 = vrot.slane %v121, %v339
    %v341 = vsel %vm319, %v340, %v336
    %v342 = vlaneseq
    %v343 = vshrl.u32 %v342, 7
    %v344 = vsub.s32 %v321, %v343
    %v345 = vrot.slane %v123, %v344
    %v346 = vsel %vm326, %v345, %v341
    %v347 = vlaneseq
    %v348 = vshrl.u32 %v347, 7
    %v349 = vsub.s32 %v302, %v348
    %v350 = vrot.slane %v125, %v349
    %v351 = vlaneseq
    %v352 = vshrl.u32 %v351, 7
    %v353 = vsub.s32 %v307, %v352
    %v354 = vrot.slane %v127, %v353
    %v355 = vsel %vm312, %v354, %v350
    %v356 = vlaneseq
    %v357 = vshrl.u32 %v356, 7
    %v358 = vsub.s32 %v314, %v357
    %v359 = vrot.slane %v129, %v358
    %v360 = vsel %vm319, %v359, %v355
    %v361 = vlaneseq
    %v362 = vshrl.u32 %v361, 7
    %v363 = vsub.s32 %v321, %v362
    %v364 = vrot.slane %v131, %v363
    %v365 = vsel %vm326, %v364, %v360
    %v366 = vlaneseq
    %v367 = vshrl.u32 %v366, 7
    %v368 = vsub.s32 %v302, %v367
    %v369 = vrot.slane %v133, %v368
    %v370 = vlaneseq
    %v371 = vshrl.u32 %v370, 7
    %v372 = vsub.s32 %v307, %v371
    %v373 = vrot.slane %v135, %v372
    %v374 = vsel %vm312, %v373, %v369
    %v375 = vlaneseq
    %v376 = vshrl.u32 %v375, 7
    %v377 = vsub.s32 %v314, %v376
    %v378 = vrot.slane %v137, %v377
    %v379 = vsel %vm319, %v378, %v374
    %v380 = vlaneseq
    %v381 = vshrl.u32 %v380, 7
    %v382 = vsub.s32 %v321, %v381
    %v383 = vrot.slane %v139, %v382
    %v384 = vsel %vm326, %v383, %v379
    %v385 = vlaneseq
    %v386 = vshrl.u32 %v385, 7
    %v387 = vsub.s32 %v302, %v386
    %v388 = vrot.slane %v141, %v387
    %v389 = vlaneseq
    %v390 = vshrl.u32 %v389, 7
    %v391 = vsub.s32 %v307, %v390
    %v392 = vrot.slane %v143, %v391
    %v393 = vsel %vm312, %v392, %v388
    %v394 = vlaneseq
    %v395 = vshrl.u32 %v394, 7
    %v396 = vsub.s32 %v314, %v395
    %v397 = vrot.slane %v145, %v396
    %v398 = vsel %vm319, %v397, %v393
    %v399 = vlaneseq
    %v400 = vshrl.u32 %v399, 7
    %v401 = vsub.s32 %v321, %v400
    %v402 = vrot.slane %v147, %v401
    %v403 = vsel %vm326, %v402, %v398
    %v404 = vlaneseq
    %v405 = vshrl.u32 %v404, 7
    %v406 = vsub.s32 %v302, %v405
    %v407 = vrot.slane %v149, %v406
    %v408 = vlaneseq
    %v409 = vshrl.u32 %v408, 7
    %v410 = vsub.s32 %v307, %v409
    %v411 = vrot.slane %v151, %v410
    %v412 = vsel %vm312, %v411, %v407
    %v413 = vlaneseq
    %v414 = vshrl.u32 %v413, 7
    %v415 = vsub.s32 %v314, %v414
    %v416 = vrot.slane %v153, %v415
    %v417 = vsel %vm319, %v416, %v412
    %v418 = vlaneseq
    %v419 = vshrl.u32 %v418, 7
    %v420 = vsub.s32 %v321, %v419
    %v421 = vrot.slane %v155, %v420
    %v422 = vsel %vm326, %v421, %v417
    %v423 = vlaneseq
    %v424 = vshrl.u32 %v423, 7
    %v425 = vsub.s32 %v302, %v424
    %v426 = vrot.slane %v157, %v425
    %v427 = vlaneseq
    %v428 = vshrl.u32 %v427, 7
    %v429 = vsub.s32 %v307, %v428
    %v430 = vrot.slane %v159, %v429
    %v431 = vsel %vm312, %v430, %v426
    %v432 = vlaneseq
    %v433 = vshrl.u32 %v432, 7
    %v434 = vsub.s32 %v314, %v433
    %v435 = vrot.slane %v161, %v434
    %v436 = vsel %vm319, %v435, %v431
    %v437 = vlaneseq
    %v438 = vshrl.u32 %v437, 7
    %v439 = vsub.s32 %v321, %v438
    %v440 = vrot.slane %v163, %v439
    %v441 = vsel %vm326, %v440, %v436
    %v442 = vlaneseq
    %v443 = vshrl.u32 %v442, 7
    %v444 = vsub.s32 %v302, %v443
    %v445 = vrot.slane %v165, %v444
    %v446 = vlaneseq
    %v447 = vshrl.u32 %v446, 7
    %v448 = vsub.s32 %v307, %v447
    %v449 = vrot.slane %v167, %v448
    %v450 = vsel %vm312, %v449, %v445
    %v451 = vlaneseq
    %v452 = vshrl.u32 %v451, 7
    %v453 = vsub.s32 %v314, %v452
    %v454 = vrot.slane %v169, %v453
    %v455 = vsel %vm319, %v454, %v450
    %v456 = vlaneseq
    %v457 = vshrl.u32 %v456, 7
    %v458 = vsub.s32 %v321, %v457
    %v459 = vrot.slane %v171, %v458
    %v460 = vsel %vm326, %v459, %v455
    %vm461 = vcmask 1041409
    %v462 = vsel %vm461, %v346, %v327
    %vm463 = vcmask 1042434
    %v464 = vsel %vm463, %v365, %v462
    %vm465 = vcmask 1043459
    %v466 = vsel %vm465, %v384, %v464
    %vm467 = vcmask 1044484
    %v468 = vsel %vm467, %v403, %v466
    %vm469 = vcmask 1045509
    %v470 = vsel %vm469, %v422, %v468
    %vm471 = vcmask 1046534
    %v472 = vsel %vm471, %v441, %v470
    %vm473 = vcmask 1047559
    %v474 = vsel %vm473, %v460, %v472
    %v507 = vlaneseq
    %v508 = vshrl.u32 %v507, 7
    %v509 = vsub.s32 %v302, %v508
    %v510 = vrot.slane %v237, %v509
    %v511 = vlaneseq
    %v512 = vshrl.u32 %v511, 7
    %v513 = vsub.s32 %v307, %v512
    %v514 = vrot.slane %v238, %v513
    %v515 = vsel %vm312, %v514, %v510
    %v516 = vlaneseq
    %v517 = vshrl.u32 %v516, 7
    %v518 = vsub.s32 %v314, %v517
    %v519 = vrot.slane %v239, %v518
    %v520 = vsel %vm319, %v519, %v515
    %v521 = vlaneseq
    %v522 = vshrl.u32 %v521, 7
    %v523 = vsub.s32 %v321, %v522
    %v524 = vrot.slane %v240, %v523
    %v525 = vsel %vm326, %v524, %v520
    %v526 = vlaneseq
    %v527 = vshrl.u32 %v526, 7
    %v528 = vsub.s32 %v302, %v527
    %v529 = vrot.slane %v241, %v528
    %v530 = vlaneseq
    %v531 = vshrl.u32 %v530, 7
    %v532 = vsub.s32 %v307, %v531
    %v533 = vrot.slane %v242, %v532
    %v534 = vsel %vm312, %v533, %v529
    %v535 = vlaneseq
    %v536 = vshrl.u32 %v535, 7
    %v537 = vsub.s32 %v314, %v536
    %v538 = vrot.slane %v243, %v537
    %v539 = vsel %vm319, %v538, %v534
    %v540 = vlaneseq
    %v541 = vshrl.u32 %v540, 7
    %v542 = vsub.s32 %v321, %v541
    %v543 = vrot.slane %v244, %v542
    %v544 = vsel %vm326, %v543, %v539
    %v545 = vlaneseq
    %v546 = vshrl.u32 %v545, 7
    %v547 = vsub.s32 %v302, %v546
    %v548 = vrot.slane %v245, %v547
    %v549 = vlaneseq
    %v550 = vshrl.u32 %v549, 7
    %v551 = vsub.s32 %v307, %v550
    %v552 = vrot.slane %v246, %v551
    %v553 = vsel %vm312, %v552, %v548
    %v554 = vlaneseq
    %v555 = vshrl.u32 %v554, 7
    %v556 = vsub.s32 %v314, %v555
    %v557 = vrot.slane %v247, %v556
    %v558 = vsel %vm319, %v557, %v553
    %v559 = vlaneseq
    %v560 = vshrl.u32 %v559, 7
    %v561 = vsub.s32 %v321, %v560
    %v562 = vrot.slane %v248, %v561
    %v563 = vsel %vm326, %v562, %v558
    %v564 = vlaneseq
    %v565 = vshrl.u32 %v564, 7
    %v566 = vsub.s32 %v302, %v565
    %v567 = vrot.slane %v249, %v566
    %v568 = vlaneseq
    %v569 = vshrl.u32 %v568, 7
    %v570 = vsub.s32 %v307, %v569
    %v571 = vrot.slane %v250, %v570
    %v572 = vsel %vm312, %v571, %v567
    %v573 = vlaneseq
    %v574 = vshrl.u32 %v573, 7
    %v575 = vsub.s32 %v314, %v574
    %v576 = vrot.slane %v251, %v575
    %v577 = vsel %vm319, %v576, %v572
    %v578 = vlaneseq
    %v579 = vshrl.u32 %v578, 7
    %v580 = vsub.s32 %v321, %v579
    %v581 = vrot.slane %v252, %v580
    %v582 = vsel %vm326, %v581, %v577
    %v583 = vlaneseq
    %v584 = vshrl.u32 %v583, 7
    %v585 = vsub.s32 %v302, %v584
    %v586 = vrot.slane %v253, %v585
    %v587 = vlaneseq
    %v588 = vshrl.u32 %v587, 7
    %v589 = vsub.s32 %v307, %v588
    %v590 = vrot.slane %v254, %v589
    %v591 = vsel %vm312, %v590, %v586
    %v592 = vlaneseq
    %v593 = vshrl.u32 %v592, 7
    %v594 = vsub.s32 %v314, %v593
    %v595 = vrot.slane %v255, %v594
    %v596 = vsel %vm319, %v595, %v591
    %v597 = vlaneseq
    %v598 = vshrl.u32 %v597, 7
    %v599 = vsub.s32 %v321, %v598
    %v600 = vrot.slane %v256, %v599
    %v601 = vsel %vm326, %v600, %v596
    %v602 = vlaneseq
    %v603 = vshrl.u32 %v602, 7
    %v604 = vsub.s32 %v302, %v603
    %v605 = vrot.slane %v257, %v604
    %v606 = vlaneseq
    %v607 = vshrl.u32 %v606, 7
    %v608 = vsub.s32 %v307, %v607
    %v609 = vrot.slane %v258, %v608
    %v610 = vsel %vm312, %v609, %v605
    %v611 = vlaneseq
    %v612 = vshrl.u32 %v611, 7
    %v613 = vsub.s32 %v314, %v612
    %v614 = vrot.slane %v259, %v613
    %v615 = vsel %vm319, %v614, %v610
    %v616 = vlaneseq
    %v617 = vshrl.u32 %v616, 7
    %v618 = vsub.s32 %v321, %v617
    %v619 = vrot.slane %v260, %v618
    %v620 = vsel %vm326, %v619, %v615
    %v621 = vlaneseq
    %v622 = vshrl.u32 %v621, 7
    %v623 = vsub.s32 %v302, %v622
    %v624 = vrot.slane %v261, %v623
    %v625 = vlaneseq
    %v626 = vshrl.u32 %v625, 7
    %v627 = vsub.s32 %v307, %v626
    %v628 = vrot.slane %v262, %v627
    %v629 = vsel %vm312, %v628, %v624
    %v630 = vlaneseq
    %v631 = vshrl.u32 %v630, 7
    %v632 = vsub.s32 %v314, %v631
    %v633 = vrot.slane %v263, %v632
    %v634 = vsel %vm319, %v633, %v629
    %v635 = vlaneseq
    %v636 = vshrl.u32 %v635, 7
    %v637 = vsub.s32 %v321, %v636
    %v638 = vrot.slane %v264, %v637
    %v639 = vsel %vm326, %v638, %v634
    %v640 = vlaneseq
    %v641 = vshrl.u32 %v640, 7
    %v642 = vsub.s32 %v302, %v641
    %v643 = vrot.slane %v265, %v642
    %v644 = vlaneseq
    %v645 = vshrl.u32 %v644, 7
    %v646 = vsub.s32 %v307, %v645
    %v647 = vrot.slane %v266, %v646
    %v648 = vsel %vm312, %v647, %v643
    %v649 = vlaneseq
    %v650 = vshrl.u32 %v649, 7
    %v651 = vsub.s32 %v314, %v650
    %v652 = vrot.slane %v267, %v651
    %v653 = vsel %vm319, %v652, %v648
    %v654 = vlaneseq
    %v655 = vshrl.u32 %v654, 7
    %v656 = vsub.s32 %v321, %v655
    %v657 = vrot.slane %v268, %v656
    %v658 = vsel %vm326, %v657, %v653
    %v659 = vsel %vm461, %v544, %v525
    %v660 = vsel %vm463, %v563, %v659
    %v661 = vsel %vm465, %v582, %v660
    %v662 = vsel %vm467, %v601, %v661
    %v663 = vsel %vm469, %v620, %v662
    %v664 = vsel %vm471, %v639, %v663
    %v665 = vsel %vm473, %v658, %v664
    %v666 = vld [vmem:[%s1] sm:$0xff]
    %v667 = vld [vmem:[%s1 + $0x8] sm:$0xff]
    %v668 = vld [vmem:[%s1 + $0x10] sm:$0xff]
    %v669 = vld [vmem:[%s1 + $0x18] sm:$0xff]
    %vm670 = vcmask 261120
    %v671 = vsel %vm670, %v474, 0
    %v673 = vsel %vm670, %v665, 0
    %675 = vmatprep.subr.mxu0 0.0
    %676 = vmatpush1.msra.mxu0 0.0
    %677 = vmatprep.subr.mxu0 0.0
    %678 = vmatpush1.msra.mxu0 0.0
    %679 = vmatprep.subr.mxu0 0.0
    %680 = vmatpush1.msra.mxu0 0.0
    %681 = vmatprep.subr.mxu0 0.0
    %682 = vmatpush1.msra.mxu0 0.0
    %683 = vmatprep.subr.mxu0 0.0
    %684 = vmatpush1.msra.mxu0 0.0
    %685 = vmatprep.subr.mxu0 0.0
    %686 = vmatpush1.msra.mxu0 0.0
    %687 = vmatprep.subr.mxu0 0.0
    %688 = vmatpush1.msra.mxu0 0.0
    %689 = vmatprep.subr.mxu0 0.0
    %690 = vmatpush1.msra.mxu0 0.0
    %691 = vmatprep.subr.mxu0 0.0
    %692 = vmatpush1.msra.mxu0 0.0
    %693 = vmatprep.subr.mxu0 0.0
    %694 = vmatpush1.msra.mxu0 0.0
    %695 = vmatprep.subr.mxu0 0.0
    %696 = vmatpush1.msra.mxu0 0.0
    %697 = vmatprep.subr.mxu0 0.0
    %698 = vmatpush1.msra.mxu0 0.0
    %699 = vmatprep.subr.mxu0 0.0
    %700 = vmatpush1.msra.mxu0 %v669
    %701 = vmatprep.subr.mxu0 0.0
    %702 = vmatpush1.msra.mxu0 %v668
    %703 = vmatprep.subr.mxu0 0.0
    %704 = vmatpush1.msra.mxu0 %v667
    %705 = vmatprep.subr.mxu0 0.0
    %706 = vmatpush1.msra.mxu0 %v666
    %707 = vmatprep.subr.mxu0 0.0
    %708 = vmatpush2.msra.mxu0 0.0
    %709 = vmatprep.subr.mxu0 0.0
    %710 = vmatpush2.msra.mxu0 0.0
    %711 = vmatprep.subr.mxu0 0.0
    %712 = vmatpush2.msra.mxu0 0.0
    %713 = vmatprep.subr.mxu0 0.0
    %714 = vmatpush2.msra.mxu0 0.0
    %715 = vmatprep.subr.mxu0 0.0
    %716 = vmatpush2.msra.mxu0 0.0
    %717 = vmatprep.subr.mxu0 0.0
    %718 = vmatpush2.msra.mxu0 0.0
    %719 = vmatprep.subr.mxu0 0.0
    %720 = vmatpush2.msra.mxu0 0.0
    %721 = vmatprep.subr.mxu0 0.0
    %722 = vmatpush2.msra.mxu0 0.0
    %723 = vmatprep.subr.mxu0 0.0
    %724 = vmatpush2.msra.mxu0 0.0
    %725 = vmatprep.subr.mxu0 0.0
    %726 = vmatpush2.msra.mxu0 0.0
    %727 = vmatprep.subr.mxu0 0.0
    %728 = vmatpush2.msra.mxu0 0.0
    %729 = vmatprep.subr.mxu0 0.0
    %730 = vmatpush2.msra.mxu0 0.0
    %731 = vmatprep.subr.mxu0 0.0
    %732 = vmatpush2.msra.mxu0 0.0
    %733 = vmatprep.subr.mxu0 0.0
    %734 = vmatpush2.msra.mxu0 0.0
    %735 = vmatprep.subr.mxu0 0.0
    %736 = vmatpush2.msra.mxu0 0.0
    %737 = vmatprep.subr.mxu0 0.0
    %738 = vmatpush2.msra.mxu0 0.0
    %739 = vmatprep.mubr.f32.mxu0 0.0
    %740 = vmatmul.mubr.f32.gmra.mxu0 %v671
    %v741 = vpop.f32.mrf.mxu0
    %v742 = vadd.f32 0.0, %v741
    %v743 = vpop.f32.mrf.mxu0
    %744 = vmatprep.mubr.f32.mxu0 0.0
    %745 = vmatmul.mubr.f32.gmra.mxu0 %v673
    %v746 = vpop.f32.mrf.mxu0
    %v747 = vadd.f32 0.0, %v746
    %v748 = vpop.f32.mrf.mxu0
    %749 = vdwg.mxu0
    %v750 = vmax.f32 %v742, 0.0
    %v751 = vmax.f32 %v747, 0.0
    %v752 = vld [vmem:[%s2] sm:$0x3]
    %vm753 = vcmask 15360
    %v755 = vsel %vm753, %v750, 0
    %v758 = vsel %vm753, %v751, 0
    %vm760 = vcmask 1041408
    %v762 = vsel %vm760, %v752, 0
    %764 = vmatprep.subr.mxu0 0.0
    %765 = vmatpush1.msra.mxu0 0.0
    %766 = vmatprep.subr.mxu0 0.0
    %767 = vmatpush1.msra.mxu0 0.0
    %768 = vmatprep.subr.mxu0 0.0
    %769 = vmatpush1.msra.mxu0 0.0
    %770 = vmatprep.subr.mxu0 0.0
    %771 = vmatpush1.msra.mxu0 0.0
    %772 = vmatprep.subr.mxu0 0.0
    %773 = vmatpush1.msra.mxu0 0.0
    %774 = vmatprep.subr.mxu0 0.0
    %775 = vmatpush1.msra.mxu0 0.0
    %776 = vmatprep.subr.mxu0 0.0
    %777 = vmatpush1.msra.mxu0 0.0
    %778 = vmatprep.subr.mxu0 0.0
    %779 = vmatpush1.msra.mxu0 0.0
    %780 = vmatprep.subr.mxu0 0.0
    %781 = vmatpush1.msra.mxu0 0.0
    %782 = vmatprep.subr.mxu0 0.0
    %783 = vmatpush1.msra.mxu0 0.0
    %784 = vmatprep.subr.mxu0 0.0
    %785 = vmatpush1.msra.mxu0 0.0
    %786 = vmatprep.subr.mxu0 0.0
    %787 = vmatpush1.msra.mxu0 0.0
    %788 = vmatprep.subr.mxu0 0.0
    %789 = vmatpush1.msra.mxu0 0.0
    %790 = vmatprep.subr.mxu0 0.0
    %791 = vmatpush1.msra.mxu0 0.0
    %792 = vmatprep.subr.mxu0 0.0
    %793 = vmatpush1.msra.mxu0 0.0
    %794 = vmatprep.subr.mxu0 0.0
    %795 = vmatpush1.msra.mxu0 %v762
    %796 = vmatprep.subr.mxu0 0.0
    %797 = vmatpush2.msra.mxu0 0.0
    %798 = vmatprep.subr.mxu0 0.0
    %799 = vmatpush2.msra.mxu0 0.0
    %800 = vmatprep.subr.mxu0 0.0
    %801 = vmatpush2.msra.mxu0 0.0
    %802 = vmatprep.subr.mxu0 0.0
    %803 = vmatpush2.msra.mxu0 0.0
    %804 = vmatprep.subr.mxu0 0.0
    %805 = vmatpush2.msra.mxu0 0.0
    %806 = vmatprep.subr.mxu0 0.0
    %807 = vmatpush2.msra.mxu0 0.0
    %808 = vmatprep.subr.mxu0 0.0
    %809 = vmatpush2.msra.mxu0 0.0
    %810 = vmatprep.subr.mxu0 0.0
    %811 = vmatpush2.msra.mxu0 0.0
    %812 = vmatprep.subr.mxu0 0.0
    %813 = vmatpush2.msra.mxu0 0.0
    %814 = vmatprep.subr.mxu0 0.0
    %815 = vmatpush2.msra.mxu0 0.0
    %816 = vmatprep.subr.mxu0 0.0
    %817 = vmatpush2.msra.mxu0 0.0
    %818 = vmatprep.subr.mxu0 0.0
    %819 = vmatpush2.msra.mxu0 0.0
    %820 = vmatprep.subr.mxu0 0.0
    %821 = vmatpush2.msra.mxu0 0.0
    %822 = vmatprep.subr.mxu0 0.0
    %823 = vmatpush2.msra.mxu0 0.0
    %824 = vmatprep.subr.mxu0 0.0
    %825 = vmatpush2.msra.mxu0 0.0
    %826 = vmatprep.subr.mxu0 0.0
    %827 = vmatpush2.msra.mxu0 0.0
    %828 = vmatprep.mubr.f32.mxu0 0.0
    %829 = vmatmul.mubr.f32.gmra.mxu0 %v755
    %v830 = vpop.f32.mrf.mxu0
    %v831 = vadd.f32 0.0, %v830
    %v832 = vpop.f32.mrf.mxu0
    %833 = vmatprep.mubr.f32.mxu0 0.0
    %834 = vmatmul.mubr.f32.gmra.mxu0 %v758
    %v835 = vpop.f32.mrf.mxu0
    %v836 = vadd.f32 0.0, %v835
    %v837 = vpop.f32.mrf.mxu0
    %838 = vdwg.mxu0
    %v839 = vadd.f32 %v831, %v836
    %v840 = vxor.u32 %v839, 2147483648
    %v841 = vmul.f32 %v840, 1.442695
    %v842 = vpow.pop %v841
    %v843 = vadd.f32 %v842, 1.0
    %v844 = vrcp.pop %v843
    %v845 = vmul.f32 1.0, %v844
    %v846 = vld [vmem:[%s3] sm:$0xff]
    %v847 = vld [vmem:[%s3 + $0x8] sm:$0xff]
    %v848 = vld [vmem:[%s3 + $0x10] sm:$0xff]
    %v849 = vld [vmem:[%s3 + $0x18] sm:$0xff]
    %v850 = vld [vmem:[%s4] sm:$0x1]
    %v852 = vlaneseq
    %v853 = vshrl.u32 %v852, 7
    %v854 = vsub.s32 0, %v853
    %v855 = vrot.slane %v850, %v854
    %v858 = vsel %vm670, %v845, 0
    %860 = vmatprep.subr.mxu0 0.0
    %861 = vmatpush1.msra.mxu0 0.0
    %862 = vmatprep.subr.mxu0 0.0
    %863 = vmatpush1.msra.mxu0 0.0
    %864 = vmatprep.subr.mxu0 0.0
    %865 = vmatpush1.msra.mxu0 0.0
    %866 = vmatprep.subr.mxu0 0.0
    %867 = vmatpush1.msra.mxu0 0.0
    %868 = vmatprep.subr.mxu0 0.0
    %869 = vmatpush1.msra.mxu0 0.0
    %870 = vmatprep.subr.mxu0 0.0
    %871 = vmatpush1.msra.mxu0 0.0
    %872 = vmatprep.subr.mxu0 0.0
    %873 = vmatpush1.msra.mxu0 0.0
    %874 = vmatprep.subr.mxu0 0.0
    %875 = vmatpush1.msra.mxu0 0.0
    %876 = vmatprep.subr.mxu0 0.0
    %877 = vmatpush1.msra.mxu0 0.0
    %878 = vmatprep.subr.mxu0 0.0
    %879 = vmatpush1.msra.mxu0 0.0
    %880 = vmatprep.subr.mxu0 0.0
    %881 = vmatpush1.msra.mxu0 0.0
    %882 = vmatprep.subr.mxu0 0.0
    %883 = vmatpush1.msra.mxu0 0.0
    %884 = vmatprep.subr.mxu0 0.0
    %885 = vmatpush1.msra.mxu0 %v849
    %886 = vmatprep.subr.mxu0 0.0
    %887 = vmatpush1.msra.mxu0 %v848
    %888 = vmatprep.subr.mxu0 0.0
    %889 = vmatpush1.msra.mxu0 %v847
    %890 = vmatprep.subr.mxu0 0.0
    %891 = vmatpush1.msra.mxu0 %v846
    %892 = vmatprep.subr.mxu0 0.0
    %893 = vmatpush2.msra.mxu0 0.0
    %894 = vmatprep.subr.mxu0 0.0
    %895 = vmatpush2.msra.mxu0 0.0
    %896 = vmatprep.subr.mxu0 0.0
    %897 = vmatpush2.msra.mxu0 0.0
    %898 = vmatprep.subr.mxu0 0.0
    %899 = vmatpush2.msra.mxu0 0.0
    %900 = vmatprep.subr.mxu0 0.0
    %901 = vmatpush2.msra.mxu0 0.0
    %902 = vmatprep.subr.mxu0 0.0
    %903 = vmatpush2.msra.mxu0 0.0
    %904 = vmatprep.subr.mxu0 0.0
    %905 = vmatpush2.msra.mxu0 0.0
    %906 = vmatprep.subr.mxu0 0.0
    %907 = vmatpush2.msra.mxu0 0.0
    %908 = vmatprep.subr.mxu0 0.0
    %909 = vmatpush2.msra.mxu0 0.0
    %910 = vmatprep.subr.mxu0 0.0
    %911 = vmatpush2.msra.mxu0 0.0
    %912 = vmatprep.subr.mxu0 0.0
    %913 = vmatpush2.msra.mxu0 0.0
    %914 = vmatprep.subr.mxu0 0.0
    %915 = vmatpush2.msra.mxu0 0.0
    %916 = vmatprep.subr.mxu0 0.0
    %917 = vmatpush2.msra.mxu0 0.0
    %918 = vmatprep.subr.mxu0 0.0
    %919 = vmatpush2.msra.mxu0 0.0
    %920 = vmatprep.subr.mxu0 0.0
    %921 = vmatpush2.msra.mxu0 0.0
    %922 = vmatprep.subr.mxu0 0.0
    %923 = vmatpush2.msra.mxu0 0.0
    %924 = vmatprep.mubr.f32.mxu0 0.0
    %925 = vmatmul.mubr.f32.gmra.mxu0 %v858
    %v926 = vpop.f32.mrf.mxu0
    %v927 = vadd.f32 %v855, %v926
    %v928 = vpop.f32.mrf.mxu0
    %929 = vdwg.mxu0
    %v930 = vmax.f32 %v927, 0.0
    %v931 = vld [vmem:[%s5] sm:$0xff]
    %v932 = vld [vmem:[%s5 + $0x8] sm:$0xff]
    %v933 = vld [vmem:[%s6] sm:$0x1]
    %v935 = vlaneseq
    %v936 = vshrl.u32 %v935, 7
    %v937 = vsub.s32 0, %v936
    %v938 = vrot.slane %v933, %v937
    %vm940 = vcmask 130048
    %v942 = vsel %vm940, %v930, 0
    %944 = vmatprep.subr.mxu0 0.0
    %945 = vmatpush1.msra.mxu0 0.0
    %946 = vmatprep.subr.mxu0 0.0
    %947 = vmatpush1.msra.mxu0 0.0
    %948 = vmatprep.subr.mxu0 0.0
    %949 = vmatpush1.msra.mxu0 0.0
    %950 = vmatprep.subr.mxu0 0.0
    %951 = vmatpush1.msra.mxu0 0.0
    %952 = vmatprep.subr.mxu0 0.0
    %953 = vmatpush1.msra.mxu0 0.0
    %954 = vmatprep.subr.mxu0 0.0
    %955 = vmatpush1.msra.mxu0 0.0
    %956 = vmatprep.subr.mxu0 0.0
    %957 = vmatpush1.msra.mxu0 0.0
    %958 = vmatprep.subr.mxu0 0.0
    %959 = vmatpush1.msra.mxu0 0.0
    %960 = vmatprep.subr.mxu0 0.0
    %961 = vmatpush1.msra.mxu0 0.0
    %962 = vmatprep.subr.mxu0 0.0
    %963 = vmatpush1.msra.mxu0 0.0
    %964 = vmatprep.subr.mxu0 0.0
    %965 = vmatpush1.msra.mxu0 0.0
    %966 = vmatprep.subr.mxu0 0.0
    %967 = vmatpush1.msra.mxu0 0.0
    %968 = vmatprep.subr.mxu0 0.0
    %969 = vmatpush1.msra.mxu0 0.0
    %970 = vmatprep.subr.mxu0 0.0
    %971 = vmatpush1.msra.mxu0 0.0
    %972 = vmatprep.subr.mxu0 0.0
    %973 = vmatpush1.msra.mxu0 %v932
    %974 = vmatprep.subr.mxu0 0.0
    %975 = vmatpush1.msra.mxu0 %v931
    %976 = vmatprep.subr.mxu0 0.0
    %977 = vmatpush2.msra.mxu0 0.0
    %978 = vmatprep.subr.mxu0 0.0
    %979 = vmatpush2.msra.mxu0 0.0
    %980 = vmatprep.subr.mxu0 0.0
    %981 = vmatpush2.msra.mxu0 0.0
    %982 = vmatprep.subr.mxu0 0.0
    %983 = vmatpush2.msra.mxu0 0.0
    %984 = vmatprep.subr.mxu0 0.0
    %985 = vmatpush2.msra.mxu0 0.0
    %986 = vmatprep.subr.mxu0 0.0
    %987 = vmatpush2.msra.mxu0 0.0
    %988 = vmatprep.subr.mxu0 0.0
    %989 = vmatpush2.msra.mxu0 0.0
    %990 = vmatprep.subr.mxu0 0.0
    %991 = vmatpush2.msra.mxu0 0.0
    %992 = vmatprep.subr.mxu0 0.0
    %993 = vmatpush2.msra.mxu0 0.0
    %994 = vmatprep.subr.mxu0 0.0
    %995 = vmatpush2.msra.mxu0 0.0
    %996 = vmatprep.subr.mxu0 0.0
    %997 = vmatpush2.msra.mxu0 0.0
    %998 = vmatprep.subr.mxu0 0.0
    %999 = vmatpush2.msra.mxu0 0.0
    %1000 = vmatprep.subr.mxu0 0.0
    %1001 = vmatpush2.msra.mxu0 0.0
    %1002 = vmatprep.subr.mxu0 0.0
    %1003 = vmatpush2.msra.mxu0 0.0
    %1004 = vmatprep.subr.mxu0 0.0
    %1005 = vmatpush2.msra.mxu0 0.0
    %1006 = vmatprep.subr.mxu0 0.0
    %1007 = vmatpush2.msra.mxu0 0.0
    %1008 = vmatprep.mubr.f32.mxu0 0.0
    %1009 = vmatmul.mubr.f32.gmra.mxu0 %v942
    %v1010 = vpop.f32.mrf.mxu0
    %v1011 = vadd.f32 %v938, %v1010
    %v1012 = vpop.f32.mrf.mxu0
    %1013 = vdwg.mxu0
    %v1014 = vxor.u32 %v1011, 2147483648
    %v1015 = vmul.f32 %v1014, 1.442695
    %v1016 = vpow.pop %v1015
    %v1017 = vadd.f32 %v1016, 1.0
    %v1018 = vrcp.pop %v1017
    %v1019 = vmul.f32 1.0, %v1018
    %v1020 = vlaneseq
    %v1021 = vshrl.u32 %v1020, 7
    %v1022 = vsub.s32 0, %v1021
    %v1023 = vrot.slane %v1019, %v1022
    %1025 = vbcast.lane.b32.xlu0 %v1023, 256
    %v1026 = vpop.permute.xlu0 %1025
    %s1028 = sor.u32 256, 8
    %1029 = vbcast.lane.b32.xlu0 %v1023, %s1028
    %v1030 = vpop.permute.xlu0 %1029
    %s1032 = sor.u32 256, 16
    %1033 = vbcast.lane.b32.xlu0 %v1023, %s1032
    %v1034 = vpop.permute.xlu0 %1033
    %s1036 = sor.u32 256, 24
    %1037 = vbcast.lane.b32.xlu0 %v1023, %s1036
    %v1038 = vpop.permute.xlu0 %1037
    %v1039 = vlaneseq
    %v1040 = vshrl.u32 %v1039, 7
    %v1041 = vsub.s32 1, %v1040
    %v1042 = vrot.slane %v1019, %v1041
    %1044 = vbcast.lane.b32.xlu0 %v1042, 256
    %v1045 = vpop.permute.xlu0 %1044
    %s1047 = sor.u32 256, 8
    %1048 = vbcast.lane.b32.xlu0 %v1042, %s1047
    %v1049 = vpop.permute.xlu0 %1048
    %s1051 = sor.u32 256, 16
    %1052 = vbcast.lane.b32.xlu0 %v1042, %s1051
    %v1053 = vpop.permute.xlu0 %1052
    %s1055 = sor.u32 256, 24
    %1056 = vbcast.lane.b32.xlu0 %v1042, %s1055
    %v1057 = vpop.permute.xlu0 %1056
    %v1058 = vlaneseq
    %v1059 = vshrl.u32 %v1058, 7
    %v1060 = vsub.s32 2, %v1059
    %v1061 = vrot.slane %v1019, %v1060
    %1063 = vbcast.lane.b32.xlu0 %v1061, 256
    %v1064 = vpop.permute.xlu0 %1063
    %s1066 = sor.u32 256, 8
    %1067 = vbcast.lane.b32.xlu0 %v1061, %s1066
    %v1068 = vpop.permute.xlu0 %1067
    %s1070 = sor.u32 256, 16
    %1071 = vbcast.lane.b32.xlu0 %v1061, %s1070
    %v1072 = vpop.permute.xlu0 %1071
    %s1074 = sor.u32 256, 24
    %1075 = vbcast.lane.b32.xlu0 %v1061, %s1074
    %v1076 = vpop.permute.xlu0 %1075
    %v1077 = vlaneseq
    %v1078 = vshrl.u32 %v1077, 7
    %v1079 = vsub.s32 3, %v1078
    %v1080 = vrot.slane %v1019, %v1079
    %1082 = vbcast.lane.b32.xlu0 %v1080, 256
    %v1083 = vpop.permute.xlu0 %1082
    %s1085 = sor.u32 256, 8
    %1086 = vbcast.lane.b32.xlu0 %v1080, %s1085
    %v1087 = vpop.permute.xlu0 %1086
    %s1089 = sor.u32 256, 16
    %1090 = vbcast.lane.b32.xlu0 %v1080, %s1089
    %v1091 = vpop.permute.xlu0 %1090
    %s1093 = sor.u32 256, 24
    %1094 = vbcast.lane.b32.xlu0 %v1080, %s1093
    %v1095 = vpop.permute.xlu0 %1094
    %v1096 = vlaneseq
    %v1097 = vshrl.u32 %v1096, 7
    %v1098 = vsub.s32 4, %v1097
    %v1099 = vrot.slane %v1019, %v1098
    %1101 = vbcast.lane.b32.xlu0 %v1099, 256
    %v1102 = vpop.permute.xlu0 %1101
    %s1104 = sor.u32 256, 8
    %1105 = vbcast.lane.b32.xlu0 %v1099, %s1104
    %v1106 = vpop.permute.xlu0 %1105
    %s1108 = sor.u32 256, 16
    %1109 = vbcast.lane.b32.xlu0 %v1099, %s1108
    %v1110 = vpop.permute.xlu0 %1109
    %s1112 = sor.u32 256, 24
    %1113 = vbcast.lane.b32.xlu0 %v1099, %s1112
    %v1114 = vpop.permute.xlu0 %1113
    %v1115 = vlaneseq
    %v1116 = vshrl.u32 %v1115, 7
    %v1117 = vsub.s32 5, %v1116
    %v1118 = vrot.slane %v1019, %v1117
    %1120 = vbcast.lane.b32.xlu0 %v1118, 256
    %v1121 = vpop.permute.xlu0 %1120
    %s1123 = sor.u32 256, 8
    %1124 = vbcast.lane.b32.xlu0 %v1118, %s1123
    %v1125 = vpop.permute.xlu0 %1124
    %s1127 = sor.u32 256, 16
    %1128 = vbcast.lane.b32.xlu0 %v1118, %s1127
    %v1129 = vpop.permute.xlu0 %1128
    %s1131 = sor.u32 256, 24
    %1132 = vbcast.lane.b32.xlu0 %v1118, %s1131
    %v1133 = vpop.permute.xlu0 %1132
    %v1134 = vlaneseq
    %v1135 = vshrl.u32 %v1134, 7
    %v1136 = vsub.s32 6, %v1135
    %v1137 = vrot.slane %v1019, %v1136
    %1139 = vbcast.lane.b32.xlu0 %v1137, 256
    %v1140 = vpop.permute.xlu0 %1139
    %s1142 = sor.u32 256, 8
    %1143 = vbcast.lane.b32.xlu0 %v1137, %s1142
    %v1144 = vpop.permute.xlu0 %1143
    %s1146 = sor.u32 256, 16
    %1147 = vbcast.lane.b32.xlu0 %v1137, %s1146
    %v1148 = vpop.permute.xlu0 %1147
    %s1150 = sor.u32 256, 24
    %1151 = vbcast.lane.b32.xlu0 %v1137, %s1150
    %v1152 = vpop.permute.xlu0 %1151
    %v1153 = vlaneseq
    %v1154 = vshrl.u32 %v1153, 7
    %v1155 = vsub.s32 7, %v1154
    %v1156 = vrot.slane %v1019, %v1155
    %1158 = vbcast.lane.b32.xlu0 %v1156, 256
    %v1159 = vpop.permute.xlu0 %1158
    %s1161 = sor.u32 256, 8
    %1162 = vbcast.lane.b32.xlu0 %v1156, %s1161
    %v1163 = vpop.permute.xlu0 %1162
    %s1165 = sor.u32 256, 16
    %1166 = vbcast.lane.b32.xlu0 %v1156, %s1165
    %v1167 = vpop.permute.xlu0 %1166
    %s1169 = sor.u32 256, 24
    %1170 = vbcast.lane.b32.xlu0 %v1156, %s1169
    %v1171 = vpop.permute.xlu0 %1170
    %v1172 = vmul.f32 %v1026, %v76
    %v1173 = vmul.f32 %v1030, %v77
    %v1174 = vmul.f32 %v1034, %v78
    %v1175 = vmul.f32 %v1038, %v79
    %v1176 = vmul.f32 %v1045, %v80
    %v1177 = vmul.f32 %v1049, %v81
    %v1178 = vmul.f32 %v1053, %v82
    %v1179 = vmul.f32 %v1057, %v83
    %v1180 = vmul.f32 %v1064, %v84
    %v1181 = vmul.f32 %v1068, %v85
    %v1182 = vmul.f32 %v1072, %v86
    %v1183 = vmul.f32 %v1076, %v87
    %v1184 = vmul.f32 %v1083, %v88
    %v1185 = vmul.f32 %v1087, %v89
    %v1186 = vmul.f32 %v1091, %v90
    %v1187 = vmul.f32 %v1095, %v91
    %v1188 = vmul.f32 %v1102, %v92
    %v1189 = vmul.f32 %v1106, %v93
    %v1190 = vmul.f32 %v1110, %v94
    %v1191 = vmul.f32 %v1114, %v95
    %v1192 = vmul.f32 %v1121, %v96
    %v1193 = vmul.f32 %v1125, %v97
    %v1194 = vmul.f32 %v1129, %v98
    %v1195 = vmul.f32 %v1133, %v99
    %v1196 = vmul.f32 %v1140, %v100
    %v1197 = vmul.f32 %v1144, %v101
    %v1198 = vmul.f32 %v1148, %v102
    %v1199 = vmul.f32 %v1152, %v103
    %v1200 = vmul.f32 %v1159, %v104
    %v1201 = vmul.f32 %v1163, %v105
    %v1202 = vmul.f32 %v1167, %v106
    %v1203 = vmul.f32 %v1171, %v107
    %v1204 = vmax.f32 %v1172, %v1173
    %v1205 = vmax.f32 %v1204, %v1174
    %v1206 = vmax.f32 %v1205, %v1175
    %v1207 = vrot.slane %v1206, 4
    %v1208 = vmax.f32 %v1206, %v1207
    %v1209 = vrot.slane %v1208, 2
    %v1210 = vmax.f32 %v1208, %v1209
    %v1211 = vrot.slane %v1210, 1
    %v1212 = vmax.f32 %v1210, %v1211
    %v1213 = vmax.f32 %v1176, %v1177
    %v1214 = vmax.f32 %v1213, %v1178
    %v1215 = vmax.f32 %v1214, %v1179
    %v1216 = vrot.slane %v1215, 4
    %v1217 = vmax.f32 %v1215, %v1216
    %v1218 = vrot.slane %v1217, 2
    %v1219 = vmax.f32 %v1217, %v1218
    %v1220 = vrot.slane %v1219, 1
    %v1221 = vmax.f32 %v1219, %v1220
    %v1222 = vmax.f32 %v1180, %v1181
    %v1223 = vmax.f32 %v1222, %v1182
    %v1224 = vmax.f32 %v1223, %v1183
    %v1225 = vrot.slane %v1224, 4
    %v1226 = vmax.f32 %v1224, %v1225
    %v1227 = vrot.slane %v1226, 2
    %v1228 = vmax.f32 %v1226, %v1227
    %v1229 = vrot.slane %v1228, 1
    %v1230 = vmax.f32 %v1228, %v1229
    %v1231 = vmax.f32 %v1184, %v1185
    %v1232 = vmax.f32 %v1231, %v1186
    %v1233 = vmax.f32 %v1232, %v1187
    %v1234 = vrot.slane %v1233, 4
    %v1235 = vmax.f32 %v1233, %v1234
    %v1236 = vrot.slane %v1235, 2
    %v1237 = vmax.f32 %v1235, %v1236
    %v1238 = vrot.slane %v1237, 1
    %v1239 = vmax.f32 %v1237, %v1238
    %v1240 = vmax.f32 %v1188, %v1189
    %v1241 = vmax.f32 %v1240, %v1190
    %v1242 = vmax.f32 %v1241, %v1191
    %v1243 = vrot.slane %v1242, 4
    %v1244 = vmax.f32 %v1242, %v1243
    %v1245 = vrot.slane %v1244, 2
    %v1246 = vmax.f32 %v1244, %v1245
    %v1247 = vrot.slane %v1246, 1
    %v1248 = vmax.f32 %v1246, %v1247
    %v1249 = vmax.f32 %v1192, %v1193
    %v1250 = vmax.f32 %v1249, %v1194
    %v1251 = vmax.f32 %v1250, %v1195
    %v1252 = vrot.slane %v1251, 4
    %v1253 = vmax.f32 %v1251, %v1252
    %v1254 = vrot.slane %v1253, 2
    %v1255 = vmax.f32 %v1253, %v1254
    %v1256 = vrot.slane %v1255, 1
    %v1257 = vmax.f32 %v1255, %v1256
    %v1258 = vmax.f32 %v1196, %v1197
    %v1259 = vmax.f32 %v1258, %v1198
    %v1260 = vmax.f32 %v1259, %v1199
    %v1261 = vrot.slane %v1260, 4
    %v1262 = vmax.f32 %v1260, %v1261
    %v1263 = vrot.slane %v1262, 2
    %v1264 = vmax.f32 %v1262, %v1263
    %v1265 = vrot.slane %v1264, 1
    %v1266 = vmax.f32 %v1264, %v1265
    %v1267 = vmax.f32 %v1200, %v1201
    %v1268 = vmax.f32 %v1267, %v1202
    %v1269 = vmax.f32 %v1268, %v1203
    %v1270 = vrot.slane %v1269, 4
    %v1271 = vmax.f32 %v1269, %v1270
    %v1272 = vrot.slane %v1271, 2
    %v1273 = vmax.f32 %v1271, %v1272
    %v1274 = vrot.slane %v1273, 1
    %v1275 = vmax.f32 %v1273, %v1274
    %v1276 = vadd.f32 %v1172, %v1173
    %v1277 = vadd.f32 %v1276, %v1174
    %v1278 = vadd.f32 %v1277, %v1175
    %v1279 = vrot.slane %v1278, 4
    %v1280 = vadd.f32 %v1278, %v1279
    %v1281 = vrot.slane %v1280, 2
    %v1282 = vadd.f32 %v1280, %v1281
    %v1283 = vrot.slane %v1282, 1
    %v1284 = vadd.f32 %v1282, %v1283
    %v1285 = vadd.f32 %v1176, %v1177
    %v1286 = vadd.f32 %v1285, %v1178
    %v1287 = vadd.f32 %v1286, %v1179
    %v1288 = vrot.slane %v1287, 4
    %v1289 = vadd.f32 %v1287, %v1288
    %v1290 = vrot.slane %v1289, 2
    %v1291 = vadd.f32 %v1289, %v1290
    %v1292 = vrot.slane %v1291, 1
    %v1293 = vadd.f32 %v1291, %v1292
    %v1294 = vadd.f32 %v1180, %v1181
    %v1295 = vadd.f32 %v1294, %v1182
    %v1296 = vadd.f32 %v1295, %v1183
    %v1297 = vrot.slane %v1296, 4
    %v1298 = vadd.f32 %v1296, %v1297
    %v1299 = vrot.slane %v1298, 2
    %v1300 = vadd.f32 %v1298, %v1299
    %v1301 = vrot.slane %v1300, 1
    %v1302 = vadd.f32 %v1300, %v1301
    %v1303 = vadd.f32 %v1184, %v1185
    %v1304 = vadd.f32 %v1303, %v1186
    %v1305 = vadd.f32 %v1304, %v1187
    %v1306 = vrot.slane %v1305, 4
    %v1307 = vadd.f32 %v1305, %v1306
    %v1308 = vrot.slane %v1307, 2
    %v1309 = vadd.f32 %v1307, %v1308
    %v1310 = vrot.slane %v1309, 1
    %v1311 = vadd.f32 %v1309, %v1310
    %v1312 = vadd.f32 %v1188, %v1189
    %v1313 = vadd.f32 %v1312, %v1190
    %v1314 = vadd.f32 %v1313, %v1191
    %v1315 = vrot.slane %v1314, 4
    %v1316 = vadd.f32 %v1314, %v1315
    %v1317 = vrot.slane %v1316, 2
    %v1318 = vadd.f32 %v1316, %v1317
    %v1319 = vrot.slane %v1318, 1
    %v1320 = vadd.f32 %v1318, %v1319
    %v1321 = vadd.f32 %v1192, %v1193
    %v1322 = vadd.f32 %v1321, %v1194
    %v1323 = vadd.f32 %v1322, %v1195
    %v1324 = vrot.slane %v1323, 4
    %v1325 = vadd.f32 %v1323, %v1324
    %v1326 = vrot.slane %v1325, 2
    %v1327 = vadd.f32 %v1325, %v1326
    %v1328 = vrot.slane %v1327, 1
    %v1329 = vadd.f32 %v1327, %v1328
    %v1330 = vadd.f32 %v1196, %v1197
    %v1331 = vadd.f32 %v1330, %v1198
    %v1332 = vadd.f32 %v1331, %v1199
    %v1333 = vrot.slane %v1332, 4
    %v1334 = vadd.f32 %v1332, %v1333
    %v1335 = vrot.slane %v1334, 2
    %v1336 = vadd.f32 %v1334, %v1335
    %v1337 = vrot.slane %v1336, 1
    %v1338 = vadd.f32 %v1336, %v1337
    %v1339 = vadd.f32 %v1200, %v1201
    %v1340 = vadd.f32 %v1339, %v1202
    %v1341 = vadd.f32 %v1340, %v1203
    %v1342 = vrot.slane %v1341, 4
    %v1343 = vadd.f32 %v1341, %v1342
    %v1344 = vrot.slane %v1343, 2
    %v1345 = vadd.f32 %v1343, %v1344
    %v1346 = vrot.slane %v1345, 1
    %v1347 = vadd.f32 %v1345, %v1346
    %v1348 = vrcp.pop 32.0
    %v1349 = vmul.f32 %v1284, %v1348
    %v1350 = vmul.f32 %v1293, %v1348
    %v1351 = vmul.f32 %v1302, %v1348
    %v1352 = vmul.f32 %v1311, %v1348
    %v1353 = vmul.f32 %v1320, %v1348
    %v1354 = vmul.f32 %v1329, %v1348
    %v1355 = vmul.f32 %v1338, %v1348
    %v1356 = vmul.f32 %v1347, %v1348
    %v1365 = vsel %vm461, %v1221, %v1212
    %v1366 = vsel %vm463, %v1230, %v1365
    %v1367 = vsel %vm465, %v1239, %v1366
    %v1368 = vsel %vm467, %v1248, %v1367
    %v1369 = vsel %vm469, %v1257, %v1368
    %v1370 = vsel %vm471, %v1266, %v1369
    %v1371 = vsel %vm473, %v1275, %v1370
    %v1381 = vsel %vm461, %v1350, %v1349
    %v1382 = vsel %vm463, %v1351, %v1381
    %v1383 = vsel %vm465, %v1352, %v1382
    %v1384 = vsel %vm467, %v1353, %v1383
    %v1385 = vsel %vm469, %v1354, %v1384
    %v1386 = vsel %vm471, %v1355, %v1385
    %v1387 = vsel %vm473, %v1356, %v1386
    %1389 = vrot.lane.b32.xlu0 %v1371, 4
    %v1390 = vpop.permute.xlu0 %1389
    %1391 = vrot.lane.b32.xlu0 %v1387, 4
    %v1392 = vpop.permute.xlu0 %1391
    %vm1393 = vcmp.ge.s32.totalorder %v302, 4
    %vm1394 = vcmp.lt.s32.totalorder %v302, 128
    %vm1395 = vmand %vm1393, %vm1394
    %v1396 = vsel %vm1395, %v1390, 0.0
    %v1397 = vsel %vm1395, %v1392, 0.0
    %s1398 = sld [smem:[#allocation7]]
    %v1399 = vstv %s1398
    %v1400 = vmul.f32 %v1399, %v1396
    %v1401 = vadd.f32 %v1400, 0.0
    %s1402 = sld [smem:[#allocation7 + $0x80]]
    %v1403 = vstv %s1402
    %v1404 = vmul.f32 %v1403, %v1397
    %v1405 = vadd.f32 %v1401, %v1404
    %1406 = vrot.lane.b32.xlu0 %v1371, 3
    %v1407 = vpop.permute.xlu0 %1406
    %1408 = vrot.lane.b32.xlu0 %v1387, 3
    %v1409 = vpop.permute.xlu0 %1408
    %vm1410 = vcmp.ge.s32.totalorder %v302, 3
    %vm1411 = vmand %vm1410, %vm1394
    %v1412 = vsel %vm1411, %v1407, 0.0
    %v1413 = vsel %vm1411, %v1409, 0.0
    %s1414 = sld [smem:[#allocation7 + $0x1]]
    %v1415 = vstv %s1414
    %v1416 = vmul.f32 %v1415, %v1412
    %v1417 = vadd.f32 %v1405, %v1416
    %s1418 = sld [smem:[#allocation7 + $0x81]]
    %v1419 = vstv %s1418
    %v1420 = vmul.f32 %v1419, %v1413
    %v1421 = vadd.f32 %v1417, %v1420
    %1422 = vrot.lane.b32.xlu0 %v1371, 2
    %v1423 = vpop.permute.xlu0 %1422
    %1424 = vrot.lane.b32.xlu0 %v1387, 2
    %v1425 = vpop.permute.xlu0 %1424
    %vm1426 = vcmp.ge.s32.totalorder %v302, 2
    %vm1427 = vmand %vm1426, %vm1394
    %v1428 = vsel %vm1427, %v1423, 0.0
    %v1429 = vsel %vm1427, %v1425, 0.0
    %s1430 = sld [smem:[#allocation7 + $0x2]]
    %v1431 = vstv %s1430
    %v1432 = vmul.f32 %v1431, %v1428
    %v1433 = vadd.f32 %v1421, %v1432
    %s1434 = sld [smem:[#allocation7 + $0x82]]
    %v1435 = vstv %s1434
    %v1436 = vmul.f32 %v1435, %v1429
    %v1437 = vadd.f32 %v1433, %v1436
    %1438 = vrot.lane.b32.xlu0 %v1371, 1
    %v1439 = vpop.permute.xlu0 %1438
    %1440 = vrot.lane.b32.xlu0 %v1387, 1
    %v1441 = vpop.permute.xlu0 %1440
    %vm1442 = vcmp.ge.s32.totalorder %v302, 1
    %vm1443 = vmand %vm1442, %vm1394
    %v1444 = vsel %vm1443, %v1439, 0.0
    %v1445 = vsel %vm1443, %v1441, 0.0
    %s1446 = sld [smem:[#allocation7 + $0x3]]
    %v1447 = vstv %s1446
    %v1448 = vmul.f32 %v1447, %v1444
    %v1449 = vadd.f32 %v1437, %v1448
    %s1450 = sld [smem:[#allocation7 + $0x83]]
    %v1451 = vstv %s1450
    %v1452 = vmul.f32 %v1451, %v1445
    %v1453 = vadd.f32 %v1449, %v1452
    %s1454 = sld [smem:[#allocation7 + $0x4]]
    %v1455 = vstv %s1454
    %v1456 = vmul.f32 %v1455, %v1371
    %v1457 = vadd.f32 %v1453, %v1456
    %s1458 = sld [smem:[#allocation7 + $0x84]]
    %v1459 = vstv %s1458
    %v1460 = vmul.f32 %v1459, %v1387
    %v1461 = vadd.f32 %v1457, %v1460
    %1462 = vrot.lane.b32.xlu0 %v1371, 127
    %v1463 = vpop.permute.xlu0 %1462
    %1464 = vrot.lane.b32.xlu0 %v1387, 127
    %v1465 = vpop.permute.xlu0 %1464
    %vm1466 = vcmp.ge.s32.totalorder %v302, 0
    %vm1467 = vcmp.lt.s32.totalorder %v302, 127
    %vm1468 = vmand %vm1466, %vm1467
    %v1469 = vsel %vm1468, %v1463, 0.0
    %v1470 = vsel %vm1468, %v1465, 0.0
    %s1471 = sld [smem:[#allocation7 + $0x5]]
    %v1472 = vstv %s1471
    %v1473 = vmul.f32 %v1472, %v1469
    %v1474 = vadd.f32 %v1461, %v1473
    %s1475 = sld [smem:[#allocation7 + $0x85]]
    %v1476 = vstv %s1475
    %v1477 = vmul.f32 %v1476, %v1470
    %v1478 = vadd.f32 %v1474, %v1477
    %1479 = vrot.lane.b32.xlu0 %v1371, 126
    %v1480 = vpop.permute.xlu0 %1479
    %1481 = vrot.lane.b32.xlu0 %v1387, 126
    %v1482 = vpop.permute.xlu0 %1481
    %vm1483 = vcmp.lt.s32.totalorder %v302, 126
    %vm1484 = vmand %vm1466, %vm1483
    %v1485 = vsel %vm1484, %v1480, 0.0
    %v1486 = vsel %vm1484, %v1482, 0.0
    %s1487 = sld [smem:[#allocation7 + $0x6]]
    %v1488 = vstv %s1487
    %v1489 = vmul.f32 %v1488, %v1485
    %v1490 = vadd.f32 %v1478, %v1489
    %s1491 = sld [smem:[#allocation7 + $0x86]]
    %v1492 = vstv %s1491
    %v1493 = vmul.f32 %v1492, %v1486
    %v1494 = vadd.f32 %v1490, %v1493
    %1495 = vrot.lane.b32.xlu0 %v1371, 125
    %v1496 = vpop.permute.xlu0 %1495
    %1497 = vrot.lane.b32.xlu0 %v1387, 125
    %v1498 = vpop.permute.xlu0 %1497
    %vm1499 = vcmp.lt.s32.totalorder %v302, 125
    %vm1500 = vmand %vm1466, %vm1499
    %v1501 = vsel %vm1500, %v1496, 0.0
    %v1502 = vsel %vm1500, %v1498, 0.0
    %s1503 = sld [smem:[#allocation7 + $0x7]]
    %v1504 = vstv %s1503
    %v1505 = vmul.f32 %v1504, %v1501
    %v1506 = vadd.f32 %v1494, %v1505
    %s1507 = sld [smem:[#allocation7 + $0x87]]
    %v1508 = vstv %s1507
    %v1509 = vmul.f32 %v1508, %v1502
    %v1510 = vadd.f32 %v1506, %v1509
    %1511 = vrot.lane.b32.xlu0 %v1371, 124
    %v1512 = vpop.permute.xlu0 %1511
    %1513 = vrot.lane.b32.xlu0 %v1387, 124
    %v1514 = vpop.permute.xlu0 %1513
    %vm1515 = vcmp.lt.s32.totalorder %v302, 124
    %vm1516 = vmand %vm1466, %vm1515
    %v1517 = vsel %vm1516, %v1512, 0.0
    %v1518 = vsel %vm1516, %v1514, 0.0
    %s1519 = sld [smem:[#allocation7 + $0x8]]
    %v1520 = vstv %s1519
    %v1521 = vmul.f32 %v1520, %v1517
    %v1522 = vadd.f32 %v1510, %v1521
    %s1523 = sld [smem:[#allocation7 + $0x88]]
    %v1524 = vstv %s1523
    %v1525 = vmul.f32 %v1524, %v1518
    %v1526 = vadd.f32 %v1522, %v1525
    %v1527 = vxor.u32 %v1526, 2147483648
    %v1528 = vmul.f32 %v1527, 1.442695
    %v1529 = vpow.pop %v1528
    %v1530 = vadd.f32 %v1529, 1.0
    %v1531 = vrcp.pop %v1530
    %v1532 = vmul.f32 1.0, %v1531
    %1533 = vrot.lane.b32.xlu0 %v1532, 3
    %v1534 = vpop.permute.xlu0 %1533
    %v1535 = vsel %vm1411, %v1534, 0.0
    %s1536 = sld [smem:[#allocation8]]
    %v1537 = vstv %s1536
    %v1538 = vmul.f32 %v1537, %v1535
    %v1539 = vadd.f32 %v1538, 0.0
    %1540 = vrot.lane.b32.xlu0 %v1532, 2
    %v1541 = vpop.permute.xlu0 %1540
    %v1542 = vsel %vm1427, %v1541, 0.0
    %s1543 = sld [smem:[#allocation8 + $0x1]]
    %v1544 = vstv %s1543
    %v1545 = vmul.f32 %v1544, %v1542
    %v1546 = vadd.f32 %v1539, %v1545
    %1547 = vrot.lane.b32.xlu0 %v1532, 1
    %v1548 = vpop.permute.xlu0 %1547
    %v1549 = vsel %vm1443, %v1548, 0.0
    %s1550 = sld [smem:[#allocation8 + $0x2]]
    %v1551 = vstv %s1550
    %v1552 = vmul.f32 %v1551, %v1549
    %v1553 = vadd.f32 %v1546, %v1552
    %s1554 = sld [smem:[#allocation8 + $0x3]]
    %v1555 = vstv %s1554
    %v1556 = vmul.f32 %v1555, %v1532
    %v1557 = vadd.f32 %v1553, %v1556
    %1558 = vrot.lane.b32.xlu0 %v1532, 127
    %v1559 = vpop.permute.xlu0 %1558
    %v1560 = vsel %vm1468, %v1559, 0.0
    %s1561 = sld [smem:[#allocation8 + $0x4]]
    %v1562 = vstv %s1561
    %v1563 = vmul.f32 %v1562, %v1560
    %v1564 = vadd.f32 %v1557, %v1563
    %1565 = vrot.lane.b32.xlu0 %v1532, 126
    %v1566 = vpop.permute.xlu0 %1565
    %v1567 = vsel %vm1484, %v1566, 0.0
    %s1568 = sld [smem:[#allocation8 + $0x5]]
    %v1569 = vstv %s1568
    %v1570 = vmul.f32 %v1569, %v1567
    %v1571 = vadd.f32 %v1564, %v1570
    %1572 = vrot.lane.b32.xlu0 %v1532, 125
    %v1573 = vpop.permute.xlu0 %1572
    %v1574 = vsel %vm1500, %v1573, 0.0
    %s1575 = sld [smem:[#allocation8 + $0x6]]
    %v1576 = vstv %s1575
    %v1577 = vmul.f32 %v1576, %v1574
    %v1578 = vadd.f32 %v1571, %v1577
    %s1579 = sld [smem:[#allocation2]]
    %v1580 = vstv %s1579
    %v1581 = vadd.f32 %v1578, %v1580
    %v1582 = vxor.u32 %v1581, 2147483648
    %v1583 = vmul.f32 %v1582, 1.442695
    %v1584 = vpow.pop %v1583
    %v1585 = vadd.f32 %v1584, 1.0
    %v1586 = vrcp.pop %v1585
    %v1587 = vmul.f32 1.0, %v1586
    %v1589 = vcombine.high %v1587, %v1587
    %v1591 = vunpack.c.l.s4 1966171168
    %v1592 = vunpack.c.0.s8 %v1591
    %v1593 = vlaneseq
    %v1594 = vshrl.u32 %v1593, 7
    %v1595 = vsub.s32 %v1592, %v1594
    %v1596 = vrot.slane %v1587, %v1595
    %v1598 = vunpack.c.l.s4 1966171168
    %v1599 = vunpack.c.0.s8 %v1598
    %v1600 = vlaneseq
    %v1601 = vshrl.u32 %v1600, 7
    %v1602 = vsub.s32 %v1599, %v1601
    %v1603 = vrot.slane %v1589, %v1602
    %v1604 = vcombine.high %v1596, %v1596
    %v1605 = vcombine.high %v1603, %v1603
    %v1607 = vunpack.c.l.s4 1966171168
    %v1608 = vunpack.c.0.s8 %v1607
    %v1609 = vlaneseq
    %v1610 = vshrl.u32 %v1609, 7
    %v1611 = vsub.s32 %v1608, %v1610
    %v1612 = vrot.slane %v1596, %v1611
    %v1614 = vunpack.c.l.s4 1966171168
    %v1615 = vunpack.c.0.s8 %v1614
    %v1616 = vlaneseq
    %v1617 = vshrl.u32 %v1616, 7
    %v1618 = vsub.s32 %v1615, %v1617
    %v1619 = vrot.slane %v1603, %v1618
    %v1621 = vunpack.c.l.s4 1966171168
    %v1622 = vunpack.c.0.s8 %v1621
    %v1623 = vlaneseq
    %v1624 = vshrl.u32 %v1623, 7
    %v1625 = vsub.s32 %v1622, %v1624
    %v1626 = vrot.slane %v1604, %v1625
    %v1628 = vunpack.c.l.s4 1966171168
    %v1629 = vunpack.c.0.s8 %v1628
    %v1630 = vlaneseq
    %v1631 = vshrl.u32 %v1630, 7
    %v1632 = vsub.s32 %v1629, %v1631
    %v1633 = vrot.slane %v1605, %v1632
    %v1634 = vcombine.high %v1612, %v1612
    %v1635 = vcombine.high %v1619, %v1619
    %v1636 = vcombine.high %v1626, %v1626
    %v1637 = vcombine.high %v1633, %v1633
    %v1638 = vlaneseq
    %v1639 = vshrl.u32 %v1638, 7
    %v1640 = vsub.s32 0, %v1639
    %v1641 = vrot.slane %v1612, %v1640
    %v1642 = vlaneseq
    %v1643 = vshrl.u32 %v1642, 7
    %v1644 = vsub.s32 0, %v1643
    %v1645 = vrot.slane %v1626, %v1644
    %v1646 = vlaneseq
    %v1647 = vshrl.u32 %v1646, 7
    %v1648 = vsub.s32 0, %v1647
    %v1649 = vrot.slane %v1634, %v1648
    %v1650 = vlaneseq
    %v1651 = vshrl.u32 %v1650, 7
    %v1652 = vsub.s32 0, %v1651
    %v1653 = vrot.slane %v1636, %v1652
    %v1654 = vlaneseq
    %v1655 = vshrl.u32 %v1654, 7
    %v1656 = vsub.s32 0, %v1655
    %v1657 = vrot.slane %v1619, %v1656
    %v1658 = vlaneseq
    %v1659 = vshrl.u32 %v1658, 7
    %v1660 = vsub.s32 0, %v1659
    %v1661 = vrot.slane %v1633, %v1660
    %v1662 = vlaneseq
    %v1663 = vshrl.u32 %v1662, 7
    %v1664 = vsub.s32 0, %v1663
    %v1665 = vrot.slane %v1635, %v1664
    %v1666 = vlaneseq
    %v1667 = vshrl.u32 %v1666, 7
    %v1668 = vsub.s32 0, %v1667
    %v1669 = vrot.slane %v1637, %v1668
    %v1678 = vmul.f32 %v1641, %v1172
    %v1679 = vmul.f32 %v1641, %v1173
    %v1680 = vmul.f32 %v1641, %v1174
    %v1681 = vmul.f32 %v1641, %v1175
    %v1682 = vmul.f32 %v1645, %v1176
    %v1683 = vmul.f32 %v1645, %v1177
    %v1684 = vmul.f32 %v1645, %v1178
    %v1685 = vmul.f32 %v1645, %v1179
    %v1686 = vmul.f32 %v1649, %v1180
    %v1687 = vmul.f32 %v1649, %v1181
    %v1688 = vmul.f32 %v1649, %v1182
    %v1689 = vmul.f32 %v1649, %v1183
    %v1690 = vmul.f32 %v1653, %v1184
    %v1691 = vmul.f32 %v1653, %v1185
    %v1692 = vmul.f32 %v1653, %v1186
    %v1693 = vmul.f32 %v1653, %v1187
    %v1694 = vmul.f32 %v1657, %v1188
    %v1695 = vmul.f32 %v1657, %v1189
    %v1696 = vmul.f32 %v1657, %v1190
    %v1697 = vmul.f32 %v1657, %v1191
    %v1698 = vmul.f32 %v1661, %v1192
    %v1699 = vmul.f32 %v1661, %v1193
    %v1700 = vmul.f32 %v1661, %v1194
    %v1701 = vmul.f32 %v1661, %v1195
    %v1702 = vmul.f32 %v1665, %v1196
    %v1703 = vmul.f32 %v1665, %v1197
    %v1704 = vmul.f32 %v1665, %v1198
    %v1705 = vmul.f32 %v1665, %v1199
    %v1706 = vmul.f32 %v1669, %v1200
    %v1707 = vmul.f32 %v1669, %v1201
    %v1708 = vmul.f32 %v1669, %v1202
    %v1709 = vmul.f32 %v1669, %v1203
    %1710 = vst [vmem:[#allocation10] sm:$0xff] %v1678
    %1711 = vst [vmem:[#allocation10 + $0x8] sm:$0xff] %v1679
    %1712 = vst [vmem:[#allocation10 + $0x10] sm:$0xff] %v1680
    %1713 = vst [vmem:[#allocation10 + $0x18] sm:$0xff] %v1681
    %1714 = vst [vmem:[#allocation10 + $0x20] sm:$0xff] %v1682
    %1715 = vst [vmem:[#allocation10 + $0x28] sm:$0xff] %v1683
    %1716 = vst [vmem:[#allocation10 + $0x30] sm:$0xff] %v1684
    %1717 = vst [vmem:[#allocation10 + $0x38] sm:$0xff] %v1685
    %1718 = vst [vmem:[#allocation10 + $0x40] sm:$0xff] %v1686
    %1719 = vst [vmem:[#allocation10 + $0x48] sm:$0xff] %v1687
    %1720 = vst [vmem:[#allocation10 + $0x50] sm:$0xff] %v1688
    %1721 = vst [vmem:[#allocation10 + $0x58] sm:$0xff] %v1689
    %1722 = vst [vmem:[#allocation10 + $0x60] sm:$0xff] %v1690
    %1723 = vst [vmem:[#allocation10 + $0x68] sm:$0xff] %v1691
    %1724 = vst [vmem:[#allocation10 + $0x70] sm:$0xff] %v1692
    %1725 = vst [vmem:[#allocation10 + $0x78] sm:$0xff] %v1693
    %1726 = vst [vmem:[#allocation10 + $0x80] sm:$0xff] %v1694
    %1727 = vst [vmem:[#allocation10 + $0x88] sm:$0xff] %v1695
    %1728 = vst [vmem:[#allocation10 + $0x90] sm:$0xff] %v1696
    %1729 = vst [vmem:[#allocation10 + $0x98] sm:$0xff] %v1697
    %1730 = vst [vmem:[#allocation10 + $0xa0] sm:$0xff] %v1698
    %1731 = vst [vmem:[#allocation10 + $0xa8] sm:$0xff] %v1699
    %1732 = vst [vmem:[#allocation10 + $0xb0] sm:$0xff] %v1700
    %1733 = vst [vmem:[#allocation10 + $0xb8] sm:$0xff] %v1701
    %1734 = vst [vmem:[#allocation10 + $0xc0] sm:$0xff] %v1702
    %1735 = vst [vmem:[#allocation10 + $0xc8] sm:$0xff] %v1703
    %1736 = vst [vmem:[#allocation10 + $0xd0] sm:$0xff] %v1704
    %1737 = vst [vmem:[#allocation10 + $0xd8] sm:$0xff] %v1705
    %1738 = vst [vmem:[#allocation10 + $0xe0] sm:$0xff] %v1706
    %1739 = vst [vmem:[#allocation10 + $0xe8] sm:$0xff] %v1707
    %1740 = vst [vmem:[#allocation10 + $0xf0] sm:$0xff] %v1708
    %1741 = vst [vmem:[#allocation10 + $0xf8] sm:$0xff] %v1709
    // Predicated region
    $region54: #{tpu_custom_call.1} parent=1 // pred_check
      _
    $region55: #{tpu_custom_call.1} parent=1 // pred_check_branch
      %1743 = sbr.rel (0) target = $region57
    $region56: #{tpu_custom_call.1} parent=1 // pred_region
      %s1745 = ssub.s32 4096, 4096
      %1746 = vsyncadd [#allocation5], %s1745
      %s1747 = sshll.u32 [#allocation10], 4
      %s1748 = int_to_ptr.vmem [resolvable:$true] %s1747
      %1753 = dma.vmem_to_hbm [thread:$0]  %s1748, 4096, %s10, [#allocation5], 128, 128, 8
    $region57: #{tpu_custom_call.1} parent=1 // pred_fallthru
      _
    // Predicated region
    $region58: #{tpu_custom_call.1} parent=1 // pred_check
      _
    $region59: #{tpu_custom_call.1} parent=1 // pred_check_branch
      %1755 = sbr.rel (0) target = $region61
    $region60: #{tpu_custom_call.1} parent=1 // pred_region
      %1756 = dma.done [#allocation5], 4096
    $region61: #{tpu_custom_call.1} parent=1 // pred_fallthru
      _
    %1757 = vsyncpa [#allocation4], 1
    %1758 = vsyncpa [#allocation5], 1
    %1759 = vsyncpa [#allocation6], 1
    %1760 = vsyncpa [#allocation9], 1

</llo_original>
